<compile_context>
chip_gen: v6e
topology: v6e:2x2x1
jax: 0.10.0
libtpu: 0.0.40
codegen_flags: <defaults>
</compile_context>

<pallas_src>
import functools
from math import sqrt

import jax
import jax.numpy as jnp
from jax.experimental import pallas as pl
from jax.experimental.pallas import tpu as pltpu

NEG_SLOPE = 0.01          # nn.LeakyReLU() default negative_slope
LANE = 128
_MIB = 1024 * 1024


def _leaky_relu(v):
    return jnp.where(v >= 0, v, NEG_SLOPE * v)


def _round_up(x, m):
    return ((x + m - 1) // m) * m


def _pad2d(a, rows, cols, dtype):
    a = a.astype(dtype)
    return jnp.pad(a, ((0, rows - a.shape[0]), (0, cols - a.shape[1])))


# --------------------------------------------------------------------------
# Hardware-aware VMEM planning
# --------------------------------------------------------------------------
@functools.lru_cache(maxsize=None)
def _vmem_capacity_bytes():
    try:
        return int(pltpu.get_tpu_info().vmem_capacity_bytes)
    except Exception:
        return 64 * _MIB            # conservative default (v7x per-core VMEM)


@functools.lru_cache(maxsize=None)
def _vmem_plan():
    """Returns (vmem_limit_bytes, planning_budget_bytes, adj_buffer_depth)."""
    cap = _vmem_capacity_bytes()
    # ~100 MiB scoped limit on 128 MiB parts (v5e/v6e), ~48 MiB on v7x.
    limit = max(32 * _MIB, min(cap - 16 * _MIB, 100 * _MIB))
    budget = limit - 4 * _MIB                       # headroom for compiler temps
    adj_buffers = 3 if cap >= 100 * _MIB else 2     # deeper adj pipeline on big-VMEM parts
    return limit, budget, adj_buffers


def _copy_probe_kernel(x_ref, o_ref):
    o_ref[...] = x_ref[...]


@functools.lru_cache(maxsize=None)
def _single_buffering_supported():
    """Probe once whether BlockSpec(pipeline_mode=pl.Buffered(n)) lowers on this
    JAX/libtpu; otherwise fall back to the default double buffering."""
    try:
        spec = pl.BlockSpec((8, 128), lambda i: (0, 0), pipeline_mode=pl.Buffered(1))
        out = pl.pallas_call(
            _copy_probe_kernel,
            out_shape=jax.ShapeDtypeStruct((8, 128), jnp.float32),
            grid=(1,),
            in_specs=[spec],
            out_specs=pl.BlockSpec((8, 128), lambda i: (0, 0)),
        )(jnp.zeros((8, 128), jnp.float32))
        jax.block_until_ready(out)
        return True
    except Exception:
        return False


def _spec(shape, index_map, buffers=None):
    """BlockSpec with an optional explicit buffer depth (1 = resident operand)."""
    if buffers is not None and buffers != 2 and _single_buffering_supported():
        return pl.BlockSpec(shape, index_map, pipeline_mode=pl.Buffered(buffers))
    return pl.BlockSpec(shape, index_map)


def _pick_tile(n_pad, bytes_for, budget, cap=1024):
    """Largest multiple-of-128 divisor of n_pad (<= cap) whose VMEM plan fits.

    When n_pad >= 256 the tile is capped at n_pad // 2 so the row grid has at
    least two steps ("parallel" can then shard across both v7x TensorCores)."""
    hi = min(cap, n_pad if n_pad < 256 else n_pad // 2)
    cands = [t for t in range(LANE, hi + 1, LANE) if n_pad % t == 0]
    fits = [t for t in cands if bytes_for(t) <= budget]
    return max(fits) if fits else None


# --------------------------------------------------------------------------
# Kernels
# --------------------------------------------------------------------------
def _gcn_fused_kernel(adj_ref, x_ref, w_ref, b_ref, out_ref):
    """out_tile = LeakyReLU((adj_tile @ x) @ W + b).  Used when d_in <= d_out
    so the N^2-wide matmul runs at the narrower feature width."""
    t = jnp.dot(adj_ref[...], x_ref[...], preferred_element_type=jnp.float32)
    # NOTE: with bf16 compute the f32 adj@x is rounded back to bf16 before the
    # second MXU pass (double rounding); acceptable for GCN tolerances.
    h = jnp.dot(t.astype(w_ref.dtype), w_ref[...],
                preferred_element_type=jnp.float32) + b_ref[...]
    out_ref[...] = _leaky_relu(h).astype(out_ref.dtype)


def _xw_kernel(x_ref, w_ref, out_ref):
    """support_tile = x_tile @ W (W resident across the row grid)."""
    out_ref[...] = jnp.dot(
        x_ref[...], w_ref[...], preferred_element_type=jnp.float32
    ).astype(out_ref.dtype)


def _adj_support_kernel(adj_ref, s_ref, b_ref, out_ref):
    """out_tile = LeakyReLU(adj_tile @ support + b); support VMEM-resident."""
    h = jnp.dot(adj_ref[...], s_ref[...],
                preferred_element_type=jnp.float32) + b_ref[...]
    out_ref[...] = _leaky_relu(h).astype(out_ref.dtype)


def _adj_support_ktiled_kernel(adj_ref, s_ref, b_ref, out_ref, acc_ref):
    """K-tiled out_tile = LeakyReLU(sum_k adj[i,k] @ support[k] + b); used when
    the full support matrix does not fit VMEM-resident."""
    k = pl.program_id(1)

    @pl.when(k == 0)
    def _():
        acc_ref[...] = jnp.zeros_like(acc_ref)

    acc_ref[...] += jnp.dot(adj_ref[...], s_ref[...],
                            preferred_element_type=jnp.float32)

    @pl.when(k == pl.num_programs(1) - 1)
    def _():
        out_ref[...] = _leaky_relu(acc_ref[...] + b_ref[...]).astype(out_ref.dtype)


# --------------------------------------------------------------------------
# Per-layer wrapper (one GraphConvolution + LeakyReLU)
# --------------------------------------------------------------------------
def _compute_support(x, w, *, tn, compute_dtype, vmem_limit):
    """support = x @ W, row-tiled, W single-buffered resident."""
    n_pad, d_in_pad = x.shape
    d_out_pad = w.shape[1]
    return pl.pallas_call(
        _xw_kernel,
        out_shape=jax.ShapeDtypeStruct((n_pad, d_out_pad), compute_dtype),
        grid_spec=pltpu.PrefetchScalarGridSpec(
            num_scalar_prefetch=0,
            grid=(n_pad // tn,),
            in_specs=[
                pl.BlockSpec((tn, d_in_pad), lambda i: (i, 0)),
                _spec((d_in_pad, d_out_pad), lambda i: (0, 0), buffers=1),
            ],
            out_specs=pl.BlockSpec((tn, d_out_pad), lambda i: (i, 0)),
        ),
        compiler_params=pltpu.CompilerParams(
            dimension_semantics=("parallel",), vmem_limit_bytes=vmem_limit),
    )(x, w)


def _gcn_layer(x, adj, w, b, *, compute_dtype, force_k_tiled=False):
    """One GraphConvolution (adj @ (x @ W) + b) fused with LeakyReLU."""
    n_pad, d_in_pad = x.shape
    d_out_pad = w.shape[1]
    esz = jnp.dtype(compute_dtype).itemsize
    limit, budget, adj_buffers = _vmem_plan()
    res_mult = 1 if _single_buffering_supported() else 2
    b2d = b.reshape(1, d_out_pad).astype(jnp.float32)

    fused = d_in_pad <= d_out_pad      # (adj @ x) @ W keeps the N^2 matmul narrow

    tn = None
    if not force_k_tiled:
        if fused:
            resident = res_mult * ((n_pad * d_in_pad + d_in_pad * d_out_pad) * esz
                                   + d_out_pad * 4)

            def bytes_for(t):
                return (resident
                        + adj_buffers * t * n_pad * esz          # adj row tiles
                        + 2 * t * d_out_pad * esz                # output tiles
                        + t * (d_in_pad + d_out_pad) * 4)        # f32 intermediates
        else:
            resident = res_mult * (n_pad * d_out_pad * esz + d_out_pad * 4)

            def bytes_for(t):
                return (resident
                        + adj_buffers * t * n_pad * esz
                        + 2 * t * d_out_pad * esz
                        + t * d_out_pad * 4)

        tn = _pick_tile(n_pad, bytes_for, budget)

    row_params = pltpu.CompilerParams(
        dimension_semantics=("parallel",), vmem_limit_bytes=limit)

    if tn is not None and fused:
        return pl.pallas_call(
            _gcn_fused_kernel,
            out_shape=jax.ShapeDtypeStruct((n_pad, d_out_pad), compute_dtype),
            grid_spec=pltpu.PrefetchScalarGridSpec(
                num_scalar_prefetch=0,
                grid=(n_pad // tn,),
                in_specs=[
                    _spec((tn, n_pad), lambda i: (i, 0), buffers=adj_buffers),
                    _spec((n_pad, d_in_pad), lambda i: (0, 0), buffers=1),
                    _spec((d_in_pad, d_out_pad), lambda i: (0, 0), buffers=1),
                    _spec((1, d_out_pad), lambda i: (0, 0), buffers=1),
                ],
                out_specs=pl.BlockSpec((tn, d_out_pad), lambda i: (i, 0)),
            ),
            compiler_params=row_params,
        )(adj, x, w, b2d)

    if tn is not None:
        # d_out < d_in: compute the narrow support = x @ W first; the N^2
        # matmul then runs at width d_out_pad with support VMEM-resident.
        support = _compute_support(x, w, tn=tn, compute_dtype=compute_dtype,
                                   vmem_limit=limit)
        return pl.pallas_call(
            _adj_support_kernel,
            out_shape=jax.ShapeDtypeStruct((n_pad, d_out_pad), compute_dtype),
            grid_spec=pltpu.PrefetchScalarGridSpec(
                num_scalar_prefetch=0,
                grid=(n_pad // tn,),
                in_specs=[
                    _spec((tn, n_pad), lambda i: (i, 0), buffers=adj_buffers),
                    _spec((n_pad, d_out_pad), lambda i: (0, 0), buffers=1),
                    _spec((1, d_out_pad), lambda i: (0, 0), buffers=1),
                ],
                out_specs=pl.BlockSpec((tn, d_out_pad), lambda i: (i, 0)),
            ),
            compiler_params=row_params,
        )(adj, support, b2d)

    # ----------------------------------------------------------------------
    # K-tiled fallback: neither x nor support fits VMEM-resident (binding on
    # v7x for large graphs).  support = x @ W streamed row-wise, then
    # adj @ support with a contraction grid axis and an f32 accumulator.
    # ----------------------------------------------------------------------
    def bytes_for_k(t):
        return (adj_buffers * t * t * esz              # adj tiles
                + 2 * t * d_out_pad * esz              # support tiles
                + 2 * t * d_out_pad * esz              # output tiles
                + t * d_out_pad * 4                    # f32 accumulator
                + res_mult * d_out_pad * 4)            # bias

    tnk = _pick_tile(n_pad, bytes_for_k, budget, cap=512) or LANE

    support = _compute_support(x, w, tn=tnk, compute_dtype=compute_dtype,
                               vmem_limit=limit)
    return pl.pallas_call(
        _adj_support_ktiled_kernel,
        out_shape=jax.ShapeDtypeStruct((n_pad, d_out_pad), compute_dtype),
        grid_spec=pltpu.PrefetchScalarGridSpec(
            num_scalar_prefetch=0,
            grid=(n_pad // tnk, n_pad // tnk),
            in_specs=[
                _spec((tnk, tnk), lambda i, k: (i, k), buffers=adj_buffers),
                pl.BlockSpec((tnk, d_out_pad), lambda i, k: (k, 0)),
                _spec((1, d_out_pad), lambda i, k: (0, 0), buffers=1),
            ],
            out_specs=pl.BlockSpec((tnk, d_out_pad), lambda i, k: (i, 0)),
            scratch_shapes=[pltpu.VMEM((tnk, d_out_pad), jnp.float32)],
        ),
        compiler_params=pltpu.CompilerParams(
            dimension_semantics=("parallel", "arbitrary"),
            vmem_limit_bytes=limit),
    )(adj, support, b2d)


# --------------------------------------------------------------------------
# Full 2-layer GCN forward
# --------------------------------------------------------------------------
def padded_num_nodes(n):
    return _round_up(max(n, LANE), LANE)


def pad_adj(adj, compute_dtype=jnp.bfloat16):
    """Pad + cast the (row-normalized) adjacency once.  For a static graph pass
    the result to gcn_forward(adj_padded=...) so the full N^2 pad/cast pass on
    the dominant tensor is not repeated every forward."""
    n_pad = padded_num_nodes(adj.shape[0])
    return _pad2d(adj, n_pad, n_pad, compute_dtype)


def gcn_forward(x, adj, w1, b1, w2, b2, *, compute_dtype=jnp.bfloat16,
                adj_padded=None, force_k_tiled=False):
    n, d_in = x.shape
    d_hid = w1.shape[1]
    d_out = w2.shape[1]

    n_p = padded_num_nodes(n)
    d_in_p = _round_up(d_in, LANE)
    d_hid_p = _round_up(d_hid, LANE)
    d_out_p = _round_up(d_out, LANE)

    cd = compute_dtype
    x_p = _pad2d(x, n_p, d_in_p, cd)
    if adj_padded is not None:
        assert adj_padded.shape == (n_p, n_p), "adj_padded has the wrong shape"
        adj_p = adj_padded.astype(cd)
    else:
        adj_p = _pad2d(adj, n_p, n_p, cd)        # zero rows/cols keep padding inert
    w1_p = _pad2d(w1, d_in_p, d_hid_p, cd)
    w2_p = _pad2d(w2, d_hid_p, d_out_p, cd)
    b1_p = jnp.pad(b1.astype(jnp.float32), (0, d_hid_p - d_hid))
    b2_p = jnp.pad(b2.astype(jnp.float32), (0, d_out_p - d_out))

    h1 = _gcn_layer(x_p, adj_p, w1_p, b1_p, compute_dtype=cd,
                    force_k_tiled=force_k_tiled)
    h2 = _gcn_layer(h1, adj_p, w2_p, b2_p, compute_dtype=cd,
                    force_k_tiled=force_k_tiled)
    return h2[:n, :d_out].astype(jnp.float32)


# --------------------------------------------------------------------------
# Init + pure-JAX reference
# --------------------------------------------------------------------------
def init_graph_conv_params(key, d_in, d_out):
    """Mirror Kipf's GraphConvolution.reset_parameters:
    uniform(-1/sqrt(d_out), 1/sqrt(d_out)) for weight and bias."""
    stdv = 1.0 / sqrt(d_out)
    kw, kb = jax.random.split(key)
    w = jax.random.uniform(kw, (d_in, d_out), jnp.float32, -stdv, stdv)
    b = jax.random.uniform(kb, (d_out,), jnp.float32, -stdv, stdv)
    return w, b


def gcn_reference(x, adj, w1, b1, w2, b2):
    h = _leaky_relu(adj @ (x @ w1) + b1[None, :])
    return _leaky_relu(adj @ (h @ w2) + b2[None, :])


if __name__ == "__main__":
    # Full-precision f32 matmuls everywhere (reference and in-kernel dots) so
    # the exact-f32 config can be checked tightly.
    jax.config.update("jax_default_matmul_precision", "highest")

    def make_problem(key, n, d_in, d_hid, d_out):
        kx, kadj, k1, k2 = jax.random.split(key, 4)
        x = jax.random.normal(kx, (n, d_in), dtype=jnp.float32)
        a = (jax.random.uniform(kadj, (n, n)) > 0.7).astype(jnp.float32)
        a = jnp.maximum(a, a.T) + jnp.eye(n, dtype=jnp.float32)
        adj = a / jnp.sum(a, axis=1, keepdims=True)
        w1, b1 = init_graph_conv_params(k1, d_in, d_hid)
        w2, b2 = init_graph_conv_params(k2, d_hid, d_out)
        return x, adj, w1, b1, w2, b2

    key = jax.random.PRNGKey(0)
    k_a, k_b = jax.random.split(key)

    # Config A: toy shapes from the module spec, exact f32 path (fused assoc).
    prob_a = make_problem(k_a, 16, 8, 32, 16)
    out_a = jax.block_until_ready(gcn_forward(*prob_a, compute_dtype=jnp.float32))
    ref_a = gcn_reference(*prob_a)
    assert out_a.shape == ref_a.shape
    assert jnp.allclose(out_a, ref_a, atol=2e-4, rtol=2e-4), "f32 mismatch vs reference"

    # Config B: n=600 -> n_pad=640 (not 1024), tn=128 (grid=(5,)), support-first
    # association for layer 1, fused for layer 2, bf16 compute, and a hoisted
    # (precomputed) padded/cast adjacency.
    prob_b = make_problem(k_b, 600, 200, 64, 16)
    x_b, adj_b, w1_b, b1_b, w2_b, b2_b = prob_b
    adj_pad_b = pad_adj(adj_b, jnp.bfloat16)        # computed once (static graph)
    ref_b = gcn_reference(*prob_b)

    out_b = jax.block_until_ready(
        gcn_forward(x_b, adj_b, w1_b, b1_b, w2_b, b2_b,
                    compute_dtype=jnp.bfloat16, adj_padded=adj_pad_b))
    assert out_b.shape == ref_b.shape
    rel_b = jnp.linalg.norm(out_b - ref_b) / jnp.linalg.norm(ref_b)
    assert rel_b < 3e-2, f"bf16 relative error too large: {rel_b}"

    # Config C: same problem forced through the K-tiled (non-VMEM-resident)
    # fallback path used for very large graphs.
    out_c = jax.block_until_ready(
        gcn_forward(x_b, adj_b, w1_b, b1_b, w2_b, b2_b,
                    compute_dtype=jnp.bfloat16, adj_padded=adj_pad_b,
                    force_k_tiled=True))
    rel_c = jnp.linalg.norm(out_c - ref_b) / jnp.linalg.norm(ref_b)
    assert rel_c < 3e-2, f"K-tiled relative error too large: {rel_c}"

    print("KERNEL_OK")
</pallas_src>

<mosaic_0001>
module attributes {stable_mosaic.version = 11 : i64} {
  func.func @_copy_probe_kernel(%arg0: i32, %arg1: memref<8x128xf32, #tpu.memory_space<vmem>>, %arg2: memref<8x128xf32, #tpu.memory_space<vmem>>) attributes {dimension_semantics = [#tpu.dimension_semantics<arbitrary>], iteration_bounds = array<i64: 1>, scalar_prefetch = 0 : i64, scratch_operands = 0 : i64, tpu.core_type = #tpu.core_type<tc>, window_params = [{pipeline_mode = #tpu.pipeline_mode<synchronous>, transform_indices = @transform_0, window_bounds = array<i64: 8, 128>}, {pipeline_mode = #tpu.pipeline_mode<synchronous>, transform_indices = @transform_1, window_bounds = array<i64: 8, 128>}]} {
    %c0 = arith.constant 0 : index
    %c0_0 = arith.constant 0 : index
    %0 = vector.load %arg1[%c0, %c0_0] : memref<8x128xf32, #tpu.memory_space<vmem>>, vector<8x128xf32>
    %c0_1 = arith.constant 0 : index
    %c0_2 = arith.constant 0 : index
    %1 = vector.load %arg2[%c0_1, %c0_2] : memref<8x128xf32, #tpu.memory_space<vmem>>, vector<8x128xf32>
    tpu.vector_store %arg2[%c0_1, %c0_2], %0 {strides = array<i32>} : memref<8x128xf32, #tpu.memory_space<vmem>>, vector<8x128xf32>,
    return
  }
  func.func @transform_0(%arg0: i32) -> (i32, i32) {
    %c0_i32 = arith.constant 0 : i32
    %c0_i32_0 = arith.constant 0 : i32
    %c0_i32_1 = arith.constant 0 : i32
    return %c0_i32, %c0_i32_0 : i32, i32
  }
  func.func @transform_1(%arg0: i32) -> (i32, i32) {
    %c0_i32 = arith.constant 0 : i32
    %c0_i32_0 = arith.constant 0 : i32
    %c0_i32_1 = arith.constant 0 : i32
    return %c0_i32, %c0_i32_0 : i32, i32
  }
}

module attributes {stable_mosaic.version = 11 : i64} {
  func.func @_gcn_fused_kernel(%arg0: i32, %arg1: memref<128x128xf32, #tpu.memory_space<vmem>>, %arg2: memref<128x128xf32, #tpu.memory_space<vmem>>, %arg3: memref<128x128xf32, #tpu.memory_space<vmem>>, %arg4: memref<1x128xf32, #tpu.memory_space<vmem>>, %arg5: memref<128x128xf32, #tpu.memory_space<vmem>>) attributes {dimension_semantics = [#tpu.dimension_semantics<parallel>], iteration_bounds = array<i64: 1>, scalar_prefetch = 0 : i64, scratch_operands = 0 : i64, tpu.core_type = #tpu.core_type<tc>, window_params = [{transform_indices = @transform_0, window_bounds = array<i64: 128, 128>}, {pipeline_mode = #tpu.pipeline_mode<synchronous>, transform_indices = @transform_1, window_bounds = array<i64: 128, 128>}, {pipeline_mode = #tpu.pipeline_mode<synchronous>, transform_indices = @transform_2, window_bounds = array<i64: 128, 128>}, {pipeline_mode = #tpu.pipeline_mode<synchronous>, transform_indices = @transform_3, window_bounds = array<i64: 1, 128>}, {transform_indices = @transform_4, window_bounds = array<i64: 128, 128>}]} {
    %c0 = arith.constant 0 : index
    %c0_0 = arith.constant 0 : index
    %0 = vector.load %arg1[%c0, %c0_0] : memref<128x128xf32, #tpu.memory_space<vmem>>, vector<128x128xf32>
    %c0_1 = arith.constant 0 : index
    %c0_2 = arith.constant 0 : index
    %1 = vector.load %arg2[%c0_1, %c0_2] : memref<128x128xf32, #tpu.memory_space<vmem>>, vector<128x128xf32>
    %cst = arith.constant dense<0.000000e+00> : vector<128x128xf32>
    %2 = tpu.matmul %0, %1, %cst {dimension_numbers = #tpu.dot_dimension_numbers<[1], [0], [0], [1], [0, 0, 1, 1], [], []>, precision = #tpu.contract_precision<fp32>} : vector<128x128xf32>, vector<128x128xf32>, vector<128x128xf32> -> vector<128x128xf32>
    %c0_3 = arith.constant 0 : index
    %c0_4 = arith.constant 0 : index
    %3 = vector.load %arg3[%c0_3, %c0_4] : memref<128x128xf32, #tpu.memory_space<vmem>>, vector<128x128xf32>
    %cst_5 = arith.constant dense<0.000000e+00> : vector<128x128xf32>
    %4 = tpu.matmul %2, %3, %cst_5 {dimension_numbers = #tpu.dot_dimension_numbers<[1], [0], [0], [1], [0, 0, 1, 1], [], []>, precision = #tpu.contract_precision<fp32>} : vector<128x128xf32>, vector<128x128xf32>, vector<128x128xf32> -> vector<128x128xf32>
    %c0_6 = arith.constant 0 : index
    %c0_7 = arith.constant 0 : index
    %5 = vector.load %arg4[%c0_6, %c0_7] : memref<1x128xf32, #tpu.memory_space<vmem>>, vector<1x128xf32>
    %6 = vector.broadcast %5 : vector<1x128xf32> to vector<128x128xf32>
    %7 = arith.addf %4, %6 : vector<128x128xf32>
    %cst_8 = arith.constant 0.000000e+00 : f32
    %8 = vector.broadcast %cst_8 : f32 to vector<128x128xf32>
    %9 = arith.cmpf oge, %7, %8 : vector<128x128xf32>
    %cst_9 = arith.constant 0.00999999977 : f32
    %10 = vector.broadcast %cst_9 : f32 to vector<128x128xf32>
    %11 = arith.mulf %10, %7 : vector<128x128xf32>
    %12 = arith.select %9, %7, %11 : vector<128x128xi1>, vector<128x128xf32>
    %c0_10 = arith.constant 0 : index
    %c0_11 = arith.constant 0 : index
    %13 = vector.load %arg5[%c0_10, %c0_11] : memref<128x128xf32, #tpu.memory_space<vmem>>, vector<128x128xf32>
    tpu.vector_store %arg5[%c0_10, %c0_11], %12 {strides = array<i32>} : memref<128x128xf32, #tpu.memory_space<vmem>>, vector<128x128xf32>,
    return
  }
  func.func @transform_0(%arg0: i32) -> (i32, i32) {
    %c0_i32 = arith.constant 0 : i32
    %c0_i32_0 = arith.constant 0 : i32
    return %arg0, %c0_i32 : i32, i32
  }
  func.func @transform_1(%arg0: i32) -> (i32, i32) {
    %c0_i32 = arith.constant 0 : i32
    %c0_i32_0 = arith.constant 0 : i32
    %c0_i32_1 = arith.constant 0 : i32
    return %c0_i32, %c0_i32_0 : i32, i32
  }
  func.func @transform_2(%arg0: i32) -> (i32, i32) {
    %c0_i32 = arith.constant 0 : i32
    %c0_i32_0 = arith.constant 0 : i32
    %c0_i32_1 = arith.constant 0 : i32
    return %c0_i32, %c0_i32_0 : i32, i32
  }
  func.func @transform_3(%arg0: i32) -> (i32, i32) {
    %c0_i32 = arith.constant 0 : i32
    %c0_i32_0 = arith.constant 0 : i32
    %c0_i32_1 = arith.constant 0 : i32
    return %c0_i32, %c0_i32_0 : i32, i32
  }
  func.func @transform_4(%arg0: i32) -> (i32, i32) {
    %c0_i32 = arith.constant 0 : i32
    %c0_i32_0 = arith.constant 0 : i32
    return %arg0, %c0_i32 : i32, i32
  }
}

</mosaic_0001>

<llo_original>
// kernel: tpu_custom_call.1
$region0: #{tpu_custom_call.1}
  #allocation0 [shape = 'u32[]', space=smem, size = 0x4, offset = 0x4, fixed_abs, tag = 'smem constant byte address 0x4 - core index']
  #allocation1 [shape = 'u32[144,128]{1,0:T(1,128)}', space=vmem, size = 0x12000, scoped, tag = 'internal scratch']
  %s0 = inlined_call_operand.hbm [shape: f32[8,128], index: 0, kind: input, shape index: {}]
  %s1 = inlined_call_operand.hbm [shape: f32[8,128], index: 1, kind: output, shape index: {}]
  %s2 = sld [smem:[#allocation0]]
  $region18: #{tpu_custom_call.1} parent=0
    _
  %s4 = ssub.s32 1, %s2
  %s5 = scalar_select 0, %s4, %s2
  $region1: #{tpu_custom_call.1} parent=0
    #allocation2 [shape = 'u8[4096]{0}', space=vmem, size = 0x1000, scoped, tag = 'input window, operand 0, single buffered']
    #allocation3 [shape = 's32[1]{0}', space=sflag, size = 0x4, scoped, tag = 'scoped memory for tpu_custom_call.1']
    #allocation4 [shape = 's32[1]{0}', space=sflag, size = 0x4, scoped, tag = 'scoped memory for tpu_custom_call.1']
    #allocation5 [shape = 'u8[4096]{0}', space=vmem, size = 0x1000, scoped, tag = 'output window, operand 0, single buffered']
    %6 = vsyncpa [#allocation3], 0
    %7 = vsyncpa [#allocation4], 0
    // Predicated region
    $region2: #{tpu_custom_call.1} parent=1 // pred_check
      _
    $region3: #{tpu_custom_call.1} parent=1 // pred_check_branch
      %9 = sbr.rel (0) target = $region5
    $region4: #{tpu_custom_call.1} parent=1 // pred_region
      %s11 = ssub.s32 128, 128
      %12 = vsyncadd [#allocation3], %s11
      %s14 = sshll.u32 [#allocation2], 4
      %s15 = int_to_ptr.vmem [resolvable:$true] %s14
      %17 = dma.hbm_to_vmem [thread:$0]  %s0, 128, %s15, [#allocation3]
    $region5: #{tpu_custom_call.1} parent=1 // pred_fallthru
      _
    // Predicated region
    $region6: #{tpu_custom_call.1} parent=1 // pred_check
      _
    $region7: #{tpu_custom_call.1} parent=1 // pred_check_branch
      %19 = sbr.rel (0) target = $region9
    $region8: #{tpu_custom_call.1} parent=1 // pred_region
      %20 = dma.done [#allocation3], 128
    $region9: #{tpu_custom_call.1} parent=1 // pred_fallthru
      _
    %v21 = vld [vmem:[#allocation2] sm:$0xff]
    %22 = vst [vmem:[#allocation5] sm:$0xff] %v21
    // Predicated region
    $region10: #{tpu_custom_call.1} parent=1 // pred_check
      _
    $region11: #{tpu_custom_call.1} parent=1 // pred_check_branch
      %24 = sbr.rel (0) target = $region13
    $region12: #{tpu_custom_call.1} parent=1 // pred_region
      %s26 = ssub.s32 128, 128
      %27 = vsyncadd [#allocation4], %s26
      %s29 = sshll.u32 [#allocation5], 4
      %s30 = int_to_ptr.vmem [resolvable:$true] %s29
      %32 = dma.vmem_to_hbm [thread:$0]  %s30, 128, %s1, [#allocation4]
    $region13: #{tpu_custom_call.1} parent=1 // pred_fallthru
      _
    // Predicated region
    $region14: #{tpu_custom_call.1} parent=1 // pred_check
      _
    $region15: #{tpu_custom_call.1} parent=1 // pred_check_branch
      %34 = sbr.rel (0) target = $region17
    $region16: #{tpu_custom_call.1} parent=1 // pred_region
      %35 = dma.done [#allocation4], 128
    $region17: #{tpu_custom_call.1} parent=1 // pred_fallthru
      _
    %36 = vsyncpa [#allocation3], 1
    %37 = vsyncpa [#allocation4], 1

// kernel: tpu_custom_call.1
$region0: #{tpu_custom_call.1}
  #allocation0 [shape = 'u32[]', space=smem, size = 0x4, offset = 0x4, fixed_abs, tag = 'smem constant byte address 0x4 - core index']
  #allocation1 [shape = 'u32[144,128]{1,0:T(1,128)}', space=vmem, size = 0x12000, scoped, tag = 'internal scratch']
  %s0 = inlined_call_operand.hbm [shape: f32[128,128], index: 0, kind: input, shape index: {}]
  %s1 = inlined_call_operand.hbm [shape: f32[128,128], index: 1, kind: input, shape index: {}]
  %s2 = inlined_call_operand.hbm [shape: f32[128,128], index: 2, kind: input, shape index: {}]
  %s3 = inlined_call_operand.vmem [shape: f32[1,128], index: 3, kind: input, shape index: {}]
  %s4 = inlined_call_operand.hbm [shape: f32[128,128], index: 4, kind: output, shape index: {}]
  %s5 = sld [smem:[#allocation0]]
  $region38: #{tpu_custom_call.1} parent=0
    _
  %s7 = ssub.s32 1, %s5
  %s8 = scalar_select 0, %s7, %s5
  $region1: #{tpu_custom_call.1} parent=0
    #allocation2 [shape = 'u8[65536]{0}', space=vmem, size = 0x10000, scoped, tag = 'input window, operand 0, single buffered']
    #allocation3 [shape = 's32[1]{0}', space=sflag, size = 0x4, scoped, tag = 'scoped memory for tpu_custom_call.1']
    #allocation4 [shape = 's32[1]{0}', space=sflag, size = 0x4, scoped, tag = 'scoped memory for tpu_custom_call.1']
    #allocation5 [shape = 'u8[65536]{0}', space=vmem, size = 0x10000, scoped, tag = 'input window, operand 1, single buffered']
    #allocation6 [shape = 's32[1]{0}', space=sflag, size = 0x4, scoped, tag = 'scoped memory for tpu_custom_call.1']
    #allocation7 [shape = 'u8[65536]{0}', space=vmem, size = 0x10000, scoped, tag = 'input window, operand 2, single buffered']
    #allocation8 [shape = 'u8[65536]{0}', space=vmem, size = 0x10000, scoped, tag = 'output window, operand 0, single buffered']
    %9 = vsyncpa [#allocation3], 0
    %10 = vsyncpa [#allocation6], 0
    %11 = vsyncpa [#allocation4], 0
    // Predicated region
    $region2: #{tpu_custom_call.1} parent=1 // pred_check
      _
    $region3: #{tpu_custom_call.1} parent=1 // pred_check_branch
      %13 = sbr.rel (0) target = $region5
    $region4: #{tpu_custom_call.1} parent=1 // pred_region
      %s15 = ssub.s32 2048, 2048
      %16 = vsyncadd [#allocation3], %s15
      %s17 = sshll.u32 [#allocation2], 4
      %s18 = int_to_ptr.vmem [resolvable:$true] %s17
      %23 = dma.hbm_to_vmem [thread:$0]  %s0, 2048, %s18, [#allocation3], 128, 128, 8
    $region5: #{tpu_custom_call.1} parent=1 // pred_fallthru
      _
    // Predicated region
    $region6: #{tpu_custom_call.1} parent=1 // pred_check
      _
    $region7: #{tpu_custom_call.1} parent=1 // pred_check_branch
      %25 = sbr.rel (0) target = $region9
    $region8: #{tpu_custom_call.1} parent=1 // pred_region
      %s27 = ssub.s32 2048, 2048
      %28 = vsyncadd [#allocation6], %s27
      %s29 = sshll.u32 [#allocation5], 4
      %s30 = int_to_ptr.vmem [resolvable:$true] %s29
      %35 = dma.hbm_to_vmem [thread:$0]  %s1, 2048, %s30, [#allocation6], 128, 128, 8
    $region9: #{tpu_custom_call.1} parent=1 // pred_fallthru
      _
    // Predicated region
    $region10: #{tpu_custom_call.1} parent=1 // pred_check
      _
    $region11: #{tpu_custom_call.1} parent=1 // pred_check_branch
      %37 = sbr.rel (0) target = $region13
    $region12: #{tpu_custom_call.1} parent=1 // pred_region
      %s39 = ssub.s32 2048, 2048
      %40 = vsyncadd [#allocation6], %s39
      %s41 = sshll.u32 [#allocation7], 4
      %s42 = int_to_ptr.vmem [resolvable:$true] %s41
      %47 = dma.hbm_to_vmem [thread:$0]  %s2, 2048, %s42, [#allocation6], 128, 128, 8
    $region13: #{tpu_custom_call.1} parent=1 // pred_fallthru
      _
    // Predicated region
    $region14: #{tpu_custom_call.1} parent=1 // pred_check
      _
    $region15: #{tpu_custom_call.1} parent=1 // pred_check_branch
      %49 = sbr.rel (0) target = $region17
    $region16: #{tpu_custom_call.1} parent=1 // pred_region
      _
    $region17: #{tpu_custom_call.1} parent=1 // pred_fallthru
      _
    // Predicated region
    $region18: #{tpu_custom_call.1} parent=1 // pred_check
      _
    $region19: #{tpu_custom_call.1} parent=1 // pred_check_branch
      %51 = sbr.rel (0) target = $region21
    $region20: #{tpu_custom_call.1} parent=1 // pred_region
      %52 = dma.done [#allocation3], 2048
    $region21: #{tpu_custom_call.1} parent=1 // pred_fallthru
      _
    // Predicated region
    $region22: #{tpu_custom_call.1} parent=1 // pred_check
      _
    $region23: #{tpu_custom_call.1} parent=1 // pred_check_branch
      %54 = sbr.rel (0) target = $region25
    $region24: #{tpu_custom_call.1} parent=1 // pred_region
      %55 = dma.done [#allocation6], 2048
    $region25: #{tpu_custom_call.1} parent=1 // pred_fallthru
      _
    // Predicated region
    $region26: #{tpu_custom_call.1} parent=1 // pred_check
      _
    $region27: #{tpu_custom_call.1} parent=1 // pred_check_branch
      %57 = sbr.rel (0) target = $region29
    $region28: #{tpu_custom_call.1} parent=1 // pred_region
      %58 = dma.done [#allocation6], 2048
    $region29: #{tpu_custom_call.1} parent=1 // pred_fallthru
      _
    %v59 = vld [vmem:[#allocation2] sm:$0xff]
    %v60 = vld [vmem:[#allocation2 + $0x8] sm:$0xff]
    %v61 = vld [vmem:[#allocation2 + $0x10] sm:$0xff]
    %v62 = vld [vmem:[#allocation2 + $0x18] sm:$0xff]
    %v63 = vld [vmem:[#allocation2 + $0x20] sm:$0xff]
    %v64 = vld [vmem:[#allocation2 + $0x28] sm:$0xff]
    %v65 = vld [vmem:[#allocation2 + $0x30] sm:$0xff]
    %v66 = vld [vmem:[#allocation2 + $0x38] sm:$0xff]
    %v67 = vld [vmem:[#allocation2 + $0x40] sm:$0xff]
    %v68 = vld [vmem:[#allocation2 + $0x48] sm:$0xff]
    %v69 = vld [vmem:[#allocation2 + $0x50] sm:$0xff]
    %v70 = vld [vmem:[#allocation2 + $0x58] sm:$0xff]
    %v71 = vld [vmem:[#allocation2 + $0x60] sm:$0xff]
    %v72 = vld [vmem:[#allocation2 + $0x68] sm:$0xff]
    %v73 = vld [vmem:[#allocation2 + $0x70] sm:$0xff]
    %v74 = vld [vmem:[#allocation2 + $0x78] sm:$0xff]
    %v75 = vld [vmem:[#allocation5] sm:$0xff]
    %v76 = vld [vmem:[#allocation5 + $0x8] sm:$0xff]
    %v77 = vld [vmem:[#allocation5 + $0x10] sm:$0xff]
    %v78 = vld [vmem:[#allocation5 + $0x18] sm:$0xff]
    %v79 = vld [vmem:[#allocation5 + $0x20] sm:$0xff]
    %v80 = vld [vmem:[#allocation5 + $0x28] sm:$0xff]
    %v81 = vld [vmem:[#allocation5 + $0x30] sm:$0xff]
    %v82 = vld [vmem:[#allocation5 + $0x38] sm:$0xff]
    %v83 = vld [vmem:[#allocation5 + $0x40] sm:$0xff]
    %v84 = vld [vmem:[#allocation5 + $0x48] sm:$0xff]
    %v85 = vld [vmem:[#allocation5 + $0x50] sm:$0xff]
    %v86 = vld [vmem:[#allocation5 + $0x58] sm:$0xff]
    %v87 = vld [vmem:[#allocation5 + $0x60] sm:$0xff]
    %v88 = vld [vmem:[#allocation5 + $0x68] sm:$0xff]
    %v89 = vld [vmem:[#allocation5 + $0x70] sm:$0xff]
    %v90 = vld [vmem:[#allocation5 + $0x78] sm:$0xff]
    %91 = vmatprep.subr.mxu0 0.0
    %v92 = vand.u32 %v90, 4294901760
    %93 = vmatpush1.msra.mxu0 %v92
    %94 = vmatprep.subr.mxu0 0.0
    %v95 = vand.u32 %v89, 4294901760
    %96 = vmatpush1.msra.mxu0 %v95
    %97 = vmatprep.subr.mxu0 0.0
    %v98 = vand.u32 %v88, 4294901760
    %99 = vmatpush1.msra.mxu0 %v98
    %100 = vmatprep.subr.mxu0 0.0
    %v101 = vand.u32 %v87, 4294901760
    %102 = vmatpush1.msra.mxu0 %v101
    %103 = vmatprep.subr.mxu0 0.0
    %v104 = vand.u32 %v86, 4294901760
    %105 = vmatpush1.msra.mxu0 %v104
    %106 = vmatprep.subr.mxu0 0.0
    %v107 = vand.u32 %v85, 4294901760
    %108 = vmatpush1.msra.mxu0 %v107
    %109 = vmatprep.subr.mxu0 0.0
    %v110 = vand.u32 %v84, 4294901760
    %111 = vmatpush1.msra.mxu0 %v110
    %112 = vmatprep.subr.mxu0 0.0
    %v113 = vand.u32 %v83, 4294901760
    %114 = vmatpush1.msra.mxu0 %v113
    %115 = vmatprep.subr.mxu0 0.0
    %v116 = vand.u32 %v82, 4294901760
    %117 = vmatpush1.msra.mxu0 %v116
    %118 = vmatprep.subr.mxu0 0.0
    %v119 = vand.u32 %v81, 4294901760
    %120 = vmatpush1.msra.mxu0 %v119
    %121 = vmatprep.subr.mxu0 0.0
    %v122 = vand.u32 %v80, 4294901760
    %123 = vmatpush1.msra.mxu0 %v122
    %124 = vmatprep.subr.mxu0 0.0
    %v125 = vand.u32 %v79, 4294901760
    %126 = vmatpush1.msra.mxu0 %v125
    %127 = vmatprep.subr.mxu0 0.0
    %v128 = vand.u32 %v78, 4294901760
    %129 = vmatpush1.msra.mxu0 %v128
    %130 = vmatprep.subr.mxu0 0.0
    %v131 = vand.u32 %v77, 4294901760
    %132 = vmatpush1.msra.mxu0 %v131
    %133 = vmatprep.subr.mxu0 0.0
    %v134 = vand.u32 %v76, 4294901760
    %135 = vmatpush1.msra.mxu0 %v134
    %136 = vmatprep.subr.mxu0 0.0
    %v137 = vand.u32 %v75, 4294901760
    %138 = vmatpush1.msra.mxu0 %v137
    %139 = vmatprep.subr.mxu0 0.0
    %140 = vmatpush2.msra.mxu0 0.0
    %141 = vmatprep.subr.mxu0 0.0
    %142 = vmatpush2.msra.mxu0 0.0
    %143 = vmatprep.subr.mxu0 0.0
    %144 = vmatpush2.msra.mxu0 0.0
    %145 = vmatprep.subr.mxu0 0.0
    %146 = vmatpush2.msra.mxu0 0.0
    %147 = vmatprep.subr.mxu0 0.0
    %148 = vmatpush2.msra.mxu0 0.0
    %149 = vmatprep.subr.mxu0 0.0
    %150 = vmatpush2.msra.mxu0 0.0
    %151 = vmatprep.subr.mxu0 0.0
    %152 = vmatpush2.msra.mxu0 0.0
    %153 = vmatprep.subr.mxu0 0.0
    %154 = vmatpush2.msra.mxu0 0.0
    %155 = vmatprep.subr.mxu0 0.0
    %156 = vmatpush2.msra.mxu0 0.0
    %157 = vmatprep.subr.mxu0 0.0
    %158 = vmatpush2.msra.mxu0 0.0
    %159 = vmatprep.subr.mxu0 0.0
    %160 = vmatpush2.msra.mxu0 0.0
    %161 = vmatprep.subr.mxu0 0.0
    %162 = vmatpush2.msra.mxu0 0.0
    %163 = vmatprep.subr.mxu0 0.0
    %164 = vmatpush2.msra.mxu0 0.0
    %165 = vmatprep.subr.mxu0 0.0
    %166 = vmatpush2.msra.mxu0 0.0
    %167 = vmatprep.subr.mxu0 0.0
    %168 = vmatpush2.msra.mxu0 0.0
    %169 = vmatprep.subr.mxu0 0.0
    %170 = vmatpush2.msra.mxu0 0.0
    %171 = vmatprep.mubr.f32.mxu0 0.0
    %v172 = vand.u32 %v59, 4294901760
    %v173 = vsub.f32 %v59, %v172
    %v174 = vand.u32 %v173, 4294901760
    %v175 = vsub.f32 %v173, %v174
    %v176 = vand.u32 %v175, 4294901760
    %177 = vmatmul.mubr.f32.gmra.mxu0 %v176
    %v178 = vpop.f32.mrf.mxu0
    %v179 = vadd.f32 0.0, %v178
    %v180 = vpop.f32.mrf.mxu0
    %181 = vmatprep.mubr.f32.mxu0 0.0
    %v182 = vand.u32 %v60, 4294901760
    %v183 = vsub.f32 %v60, %v182
    %v184 = vand.u32 %v183, 4294901760
    %v185 = vsub.f32 %v183, %v184
    %v186 = vand.u32 %v185, 4294901760
    %187 = vmatmul.mubr.f32.gmra.mxu0 %v186
    %v188 = vpop.f32.mrf.mxu0
    %v189 = vadd.f32 0.0, %v188
    %v190 = vpop.f32.mrf.mxu0
    %191 = vmatprep.mubr.f32.mxu0 0.0
    %v192 = vand.u32 %v61, 4294901760
    %v193 = vsub.f32 %v61, %v192
    %v194 = vand.u32 %v193, 4294901760
    %v195 = vsub.f32 %v193, %v194
    %v196 = vand.u32 %v195, 4294901760
    %197 = vmatmul.mubr.f32.gmra.mxu0 %v196
    %v198 = vpop.f32.mrf.mxu0
    %v199 = vadd.f32 0.0, %v198
    %v200 = vpop.f32.mrf.mxu0
    %201 = vmatprep.mubr.f32.mxu0 0.0
    %v202 = vand.u32 %v62, 4294901760
    %v203 = vsub.f32 %v62, %v202
    %v204 = vand.u32 %v203, 4294901760
    %v205 = vsub.f32 %v203, %v204
    %v206 = vand.u32 %v205, 4294901760
    %207 = vmatmul.mubr.f32.gmra.mxu0 %v206
    %v208 = vpop.f32.mrf.mxu0
    %v209 = vadd.f32 0.0, %v208
    %v210 = vpop.f32.mrf.mxu0
    %211 = vmatprep.mubr.f32.mxu0 0.0
    %v212 = vand.u32 %v63, 4294901760
    %v213 = vsub.f32 %v63, %v212
    %v214 = vand.u32 %v213, 4294901760
    %v215 = vsub.f32 %v213, %v214
    %v216 = vand.u32 %v215, 4294901760
    %217 = vmatmul.mubr.f32.gmra.mxu0 %v216
    %v218 = vpop.f32.mrf.mxu0
    %v219 = vadd.f32 0.0, %v218
    %v220 = vpop.f32.mrf.mxu0
    %221 = vmatprep.mubr.f32.mxu0 0.0
    %v222 = vand.u32 %v64, 4294901760
    %v223 = vsub.f32 %v64, %v222
    %v224 = vand.u32 %v223, 4294901760
    %v225 = vsub.f32 %v223, %v224
    %v226 = vand.u32 %v225, 4294901760
    %227 = vmatmul.mubr.f32.gmra.mxu0 %v226
    %v228 = vpop.f32.mrf.mxu0
    %v229 = vadd.f32 0.0, %v228
    %v230 = vpop.f32.mrf.mxu0
    %231 = vmatprep.mubr.f32.mxu0 0.0
    %v232 = vand.u32 %v65, 4294901760
    %v233 = vsub.f32 %v65, %v232
    %v234 = vand.u32 %v233, 4294901760
    %v235 = vsub.f32 %v233, %v234
    %v236 = vand.u32 %v235, 4294901760
    %237 = vmatmul.mubr.f32.gmra.mxu0 %v236
    %v238 = vpop.f32.mrf.mxu0
    %v239 = vadd.f32 0.0, %v238
    %v240 = vpop.f32.mrf.mxu0
    %241 = vmatprep.mubr.f32.mxu0 0.0
    %v242 = vand.u32 %v66, 4294901760
    %v243 = vsub.f32 %v66, %v242
    %v244 = vand.u32 %v243, 4294901760
    %v245 = vsub.f32 %v243, %v244
    %v246 = vand.u32 %v245, 4294901760
    %247 = vmatmul.mubr.f32.gmra.mxu0 %v246
    %v248 = vpop.f32.mrf.mxu0
    %v249 = vadd.f32 0.0, %v248
    %v250 = vpop.f32.mrf.mxu0
    %251 = vmatprep.mubr.f32.mxu0 0.0
    %v252 = vand.u32 %v67, 4294901760
    %v253 = vsub.f32 %v67, %v252
    %v254 = vand.u32 %v253, 4294901760
    %v255 = vsub.f32 %v253, %v254
    %v256 = vand.u32 %v255, 4294901760
    %257 = vmatmul.mubr.f32.gmra.mxu0 %v256
    %v258 = vpop.f32.mrf.mxu0
    %v259 = vadd.f32 0.0, %v258
    %v260 = vpop.f32.mrf.mxu0
    %261 = vmatprep.mubr.f32.mxu0 0.0
    %v262 = vand.u32 %v68, 4294901760
    %v263 = vsub.f32 %v68, %v262
    %v264 = vand.u32 %v263, 4294901760
    %v265 = vsub.f32 %v263, %v264
    %v266 = vand.u32 %v265, 4294901760
    %267 = vmatmul.mubr.f32.gmra.mxu0 %v266
    %v268 = vpop.f32.mrf.mxu0
    %v269 = vadd.f32 0.0, %v268
    %v270 = vpop.f32.mrf.mxu0
    %271 = vmatprep.mubr.f32.mxu0 0.0
    %v272 = vand.u32 %v69, 4294901760
    %v273 = vsub.f32 %v69, %v272
    %v274 = vand.u32 %v273, 4294901760
    %v275 = vsub.f32 %v273, %v274
    %v276 = vand.u32 %v275, 4294901760
    %277 = vmatmul.mubr.f32.gmra.mxu0 %v276
    %v278 = vpop.f32.mrf.mxu0
    %v279 = vadd.f32 0.0, %v278
    %v280 = vpop.f32.mrf.mxu0
    %281 = vmatprep.mubr.f32.mxu0 0.0
    %v282 = vand.u32 %v70, 4294901760
    %v283 = vsub.f32 %v70, %v282
    %v284 = vand.u32 %v283, 4294901760
    %v285 = vsub.f32 %v283, %v284
    %v286 = vand.u32 %v285, 4294901760
    %287 = vmatmul.mubr.f32.gmra.mxu0 %v286
    %v288 = vpop.f32.mrf.mxu0
    %v289 = vadd.f32 0.0, %v288
    %v290 = vpop.f32.mrf.mxu0
    %291 = vmatprep.mubr.f32.mxu0 0.0
    %v292 = vand.u32 %v71, 4294901760
    %v293 = vsub.f32 %v71, %v292
    %v294 = vand.u32 %v293, 4294901760
    %v295 = vsub.f32 %v293, %v294
    %v296 = vand.u32 %v295, 4294901760
    %297 = vmatmul.mubr.f32.gmra.mxu0 %v296
    %v298 = vpop.f32.mrf.mxu0
    %v299 = vadd.f32 0.0, %v298
    %v300 = vpop.f32.mrf.mxu0
    %301 = vmatprep.mubr.f32.mxu0 0.0
    %v302 = vand.u32 %v72, 4294901760
    %v303 = vsub.f32 %v72, %v302
    %v304 = vand.u32 %v303, 4294901760
    %v305 = vsub.f32 %v303, %v304
    %v306 = vand.u32 %v305, 4294901760
    %307 = vmatmul.mubr.f32.gmra.mxu0 %v306
    %v308 = vpop.f32.mrf.mxu0
    %v309 = vadd.f32 0.0, %v308
    %v310 = vpop.f32.mrf.mxu0
    %311 = vmatprep.mubr.f32.mxu0 0.0
    %v312 = vand.u32 %v73, 4294901760
    %v313 = vsub.f32 %v73, %v312
    %v314 = vand.u32 %v313, 4294901760
    %v315 = vsub.f32 %v313, %v314
    %v316 = vand.u32 %v315, 4294901760
    %317 = vmatmul.mubr.f32.gmra.mxu0 %v316
    %v318 = vpop.f32.mrf.mxu0
    %v319 = vadd.f32 0.0, %v318
    %v320 = vpop.f32.mrf.mxu0
    %321 = vmatprep.mubr.f32.mxu0 0.0
    %v322 = vand.u32 %v74, 4294901760
    %v323 = vsub.f32 %v74, %v322
    %v324 = vand.u32 %v323, 4294901760
    %v325 = vsub.f32 %v323, %v324
    %v326 = vand.u32 %v325, 4294901760
    %327 = vmatmul.mubr.f32.gmra.mxu0 %v326
    %v328 = vpop.f32.mrf.mxu0
    %v329 = vadd.f32 0.0, %v328
    %v330 = vpop.f32.mrf.mxu0
    %331 = vdwg.mxu0
    %332 = vmatprep.subr.mxu0 0.0
    %v333 = vand.u32 %v90, 4294901760
    %v334 = vsub.f32 %v90, %v333
    %v335 = vand.u32 %v334, 4294901760
    %v336 = vsub.f32 %v334, %v335
    %v337 = vand.u32 %v336, 4294901760
    %338 = vmatpush1.msra.mxu0 %v337
    %339 = vmatprep.subr.mxu0 0.0
    %v340 = vand.u32 %v89, 4294901760
    %v341 = vsub.f32 %v89, %v340
    %v342 = vand.u32 %v341, 4294901760
    %v343 = vsub.f32 %v341, %v342
    %v344 = vand.u32 %v343, 4294901760
    %345 = vmatpush1.msra.mxu0 %v344
    %346 = vmatprep.subr.mxu0 0.0
    %v347 = vand.u32 %v88, 4294901760
    %v348 = vsub.f32 %v88, %v347
    %v349 = vand.u32 %v348, 4294901760
    %v350 = vsub.f32 %v348, %v349
    %v351 = vand.u32 %v350, 4294901760
    %352 = vmatpush1.msra.mxu0 %v351
    %353 = vmatprep.subr.mxu0 0.0
    %v354 = vand.u32 %v87, 4294901760
    %v355 = vsub.f32 %v87, %v354
    %v356 = vand.u32 %v355, 4294901760
    %v357 = vsub.f32 %v355, %v356
    %v358 = vand.u32 %v357, 4294901760
    %359 = vmatpush1.msra.mxu0 %v358
    %360 = vmatprep.subr.mxu0 0.0
    %v361 = vand.u32 %v86, 4294901760
    %v362 = vsub.f32 %v86, %v361
    %v363 = vand.u32 %v362, 4294901760
    %v364 = vsub.f32 %v362, %v363
    %v365 = vand.u32 %v364, 4294901760
    %366 = vmatpush1.msra.mxu0 %v365
    %367 = vmatprep.subr.mxu0 0.0
    %v368 = vand.u32 %v85, 4294901760
    %v369 = vsub.f32 %v85, %v368
    %v370 = vand.u32 %v369, 4294901760
    %v371 = vsub.f32 %v369, %v370
    %v372 = vand.u32 %v371, 4294901760
    %373 = vmatpush1.msra.mxu0 %v372
    %374 = vmatprep.subr.mxu0 0.0
    %v375 = vand.u32 %v84, 4294901760
    %v376 = vsub.f32 %v84, %v375
    %v377 = vand.u32 %v376, 4294901760
    %v378 = vsub.f32 %v376, %v377
    %v379 = vand.u32 %v378, 4294901760
    %380 = vmatpush1.msra.mxu0 %v379
    %381 = vmatprep.subr.mxu0 0.0
    %v382 = vand.u32 %v83, 4294901760
    %v383 = vsub.f32 %v83, %v382
    %v384 = vand.u32 %v383, 4294901760
    %v385 = vsub.f32 %v383, %v384
    %v386 = vand.u32 %v385, 4294901760
    %387 = vmatpush1.msra.mxu0 %v386
    %388 = vmatprep.subr.mxu0 0.0
    %v389 = vand.u32 %v82, 4294901760
    %v390 = vsub.f32 %v82, %v389
    %v391 = vand.u32 %v390, 4294901760
    %v392 = vsub.f32 %v390, %v391
    %v393 = vand.u32 %v392, 4294901760
    %394 = vmatpush1.msra.mxu0 %v393
    %395 = vmatprep.subr.mxu0 0.0
    %v396 = vand.u32 %v81, 4294901760
    %v397 = vsub.f32 %v81, %v396
    %v398 = vand.u32 %v397, 4294901760
    %v399 = vsub.f32 %v397, %v398
    %v400 = vand.u32 %v399, 4294901760
    %401 = vmatpush1.msra.mxu0 %v400
    %402 = vmatprep.subr.mxu0 0.0
    %v403 = vand.u32 %v80, 4294901760
    %v404 = vsub.f32 %v80, %v403
    %v405 = vand.u32 %v404, 4294901760
    %v406 = vsub.f32 %v404, %v405
    %v407 = vand.u32 %v406, 4294901760
    %408 = vmatpush1.msra.mxu0 %v407
    %409 = vmatprep.subr.mxu0 0.0
    %v410 = vand.u32 %v79, 4294901760
    %v411 = vsub.f32 %v79, %v410
    %v412 = vand.u32 %v411, 4294901760
    %v413 = vsub.f32 %v411, %v412
    %v414 = vand.u32 %v413, 4294901760
    %415 = vmatpush1.msra.mxu0 %v414
    %416 = vmatprep.subr.mxu0 0.0
    %v417 = vand.u32 %v78, 4294901760
    %v418 = vsub.f32 %v78, %v417
    %v419 = vand.u32 %v418, 4294901760
    %v420 = vsub.f32 %v418, %v419
    %v421 = vand.u32 %v420, 4294901760
    %422 = vmatpush1.msra.mxu0 %v421
    %423 = vmatprep.subr.mxu0 0.0
    %v424 = vand.u32 %v77, 4294901760
    %v425 = vsub.f32 %v77, %v424
    %v426 = vand.u32 %v425, 4294901760
    %v427 = vsub.f32 %v425, %v426
    %v428 = vand.u32 %v427, 4294901760
    %429 = vmatpush1.msra.mxu0 %v428
    %430 = vmatprep.subr.mxu0 0.0
    %v431 = vand.u32 %v76, 4294901760
    %v432 = vsub.f32 %v76, %v431
    %v433 = vand.u32 %v432, 4294901760
    %v434 = vsub.f32 %v432, %v433
    %v435 = vand.u32 %v434, 4294901760
    %436 = vmatpush1.msra.mxu0 %v435
    %437 = vmatprep.subr.mxu0 0.0
    %v438 = vand.u32 %v75, 4294901760
    %v439 = vsub.f32 %v75, %v438
    %v440 = vand.u32 %v439, 4294901760
    %v441 = vsub.f32 %v439, %v440
    %v442 = vand.u32 %v441, 4294901760
    %443 = vmatpush1.msra.mxu0 %v442
    %444 = vmatprep.subr.mxu0 0.0
    %445 = vmatpush2.msra.mxu0 0.0
    %446 = vmatprep.subr.mxu0 0.0
    %447 = vmatpush2.msra.mxu0 0.0
    %448 = vmatprep.subr.mxu0 0.0
    %449 = vmatpush2.msra.mxu0 0.0
    %450 = vmatprep.subr.mxu0 0.0
    %451 = vmatpush2.msra.mxu0 0.0
    %452 = vmatprep.subr.mxu0 0.0
    %453 = vmatpush2.msra.mxu0 0.0
    %454 = vmatprep.subr.mxu0 0.0
    %455 = vmatpush2.msra.mxu0 0.0
    %456 = vmatprep.subr.mxu0 0.0
    %457 = vmatpush2.msra.mxu0 0.0
    %458 = vmatprep.subr.mxu0 0.0
    %459 = vmatpush2.msra.mxu0 0.0
    %460 = vmatprep.subr.mxu0 0.0
    %461 = vmatpush2.msra.mxu0 0.0
    %462 = vmatprep.subr.mxu0 0.0
    %463 = vmatpush2.msra.mxu0 0.0
    %464 = vmatprep.subr.mxu0 0.0
    %465 = vmatpush2.msra.mxu0 0.0
    %466 = vmatprep.subr.mxu0 0.0
    %467 = vmatpush2.msra.mxu0 0.0
    %468 = vmatprep.subr.mxu0 0.0
    %469 = vmatpush2.msra.mxu0 0.0
    %470 = vmatprep.subr.mxu0 0.0
    %471 = vmatpush2.msra.mxu0 0.0
    %472 = vmatprep.subr.mxu0 0.0
    %473 = vmatpush2.msra.mxu0 0.0
    %474 = vmatprep.subr.mxu0 0.0
    %475 = vmatpush2.msra.mxu0 0.0
    %476 = vmatprep.mubr.f32.mxu0 0.0
    %v477 = vand.u32 %v59, 4294901760
    %478 = vmatmul.mubr.f32.gmra.mxu0 %v477
    %v479 = vpop.f32.mrf.mxu0
    %v480 = vadd.f32 %v179, %v479
    %v481 = vpop.f32.mrf.mxu0
    %482 = vmatprep.mubr.f32.mxu0 0.0
    %v483 = vand.u32 %v60, 4294901760
    %484 = vmatmul.mubr.f32.gmra.mxu0 %v483
    %v485 = vpop.f32.mrf.mxu0
    %v486 = vadd.f32 %v189, %v485
    %v487 = vpop.f32.mrf.mxu0
    %488 = vmatprep.mubr.f32.mxu0 0.0
    %v489 = vand.u32 %v61, 4294901760
    %490 = vmatmul.mubr.f32.gmra.mxu0 %v489
    %v491 = vpop.f32.mrf.mxu0
    %v492 = vadd.f32 %v199, %v491
    %v493 = vpop.f32.mrf.mxu0
    %494 = vmatprep.mubr.f32.mxu0 0.0
    %v495 = vand.u32 %v62, 4294901760
    %496 = vmatmul.mubr.f32.gmra.mxu0 %v495
    %v497 = vpop.f32.mrf.mxu0
    %v498 = vadd.f32 %v209, %v497
    %v499 = vpop.f32.mrf.mxu0
    %500 = vmatprep.mubr.f32.mxu0 0.0
    %v501 = vand.u32 %v63, 4294901760
    %502 = vmatmul.mubr.f32.gmra.mxu0 %v501
    %v503 = vpop.f32.mrf.mxu0
    %v504 = vadd.f32 %v219, %v503
    %v505 = vpop.f32.mrf.mxu0
    %506 = vmatprep.mubr.f32.mxu0 0.0
    %v507 = vand.u32 %v64, 4294901760
    %508 = vmatmul.mubr.f32.gmra.mxu0 %v507
    %v509 = vpop.f32.mrf.mxu0
    %v510 = vadd.f32 %v229, %v509
    %v511 = vpop.f32.mrf.mxu0
    %512 = vmatprep.mubr.f32.mxu0 0.0
    %v513 = vand.u32 %v65, 4294901760
    %514 = vmatmul.mubr.f32.gmra.mxu0 %v513
    %v515 = vpop.f32.mrf.mxu0
    %v516 = vadd.f32 %v239, %v515
    %v517 = vpop.f32.mrf.mxu0
    %518 = vmatprep.mubr.f32.mxu0 0.0
    %v519 = vand.u32 %v66, 4294901760
    %520 = vmatmul.mubr.f32.gmra.mxu0 %v519
    %v521 = vpop.f32.mrf.mxu0
    %v522 = vadd.f32 %v249, %v521
    %v523 = vpop.f32.mrf.mxu0
    %524 = vmatprep.mubr.f32.mxu0 0.0
    %v525 = vand.u32 %v67, 4294901760
    %526 = vmatmul.mubr.f32.gmra.mxu0 %v525
    %v527 = vpop.f32.mrf.mxu0
    %v528 = vadd.f32 %v259, %v527
    %v529 = vpop.f32.mrf.mxu0
    %530 = vmatprep.mubr.f32.mxu0 0.0
    %v531 = vand.u32 %v68, 4294901760
    %532 = vmatmul.mubr.f32.gmra.mxu0 %v531
    %v533 = vpop.f32.mrf.mxu0
    %v534 = vadd.f32 %v269, %v533
    %v535 = vpop.f32.mrf.mxu0
    %536 = vmatprep.mubr.f32.mxu0 0.0
    %v537 = vand.u32 %v69, 4294901760
    %538 = vmatmul.mubr.f32.gmra.mxu0 %v537
    %v539 = vpop.f32.mrf.mxu0
    %v540 = vadd.f32 %v279, %v539
    %v541 = vpop.f32.mrf.mxu0
    %542 = vmatprep.mubr.f32.mxu0 0.0
    %v543 = vand.u32 %v70, 4294901760
    %544 = vmatmul.mubr.f32.gmra.mxu0 %v543
    %v545 = vpop.f32.mrf.mxu0
    %v546 = vadd.f32 %v289, %v545
    %v547 = vpop.f32.mrf.mxu0
    %548 = vmatprep.mubr.f32.mxu0 0.0
    %v549 = vand.u32 %v71, 4294901760
    %550 = vmatmul.mubr.f32.gmra.mxu0 %v549
    %v551 = vpop.f32.mrf.mxu0
    %v552 = vadd.f32 %v299, %v551
    %v553 = vpop.f32.mrf.mxu0
    %554 = vmatprep.mubr.f32.mxu0 0.0
    %v555 = vand.u32 %v72, 4294901760
    %556 = vmatmul.mubr.f32.gmra.mxu0 %v555
    %v557 = vpop.f32.mrf.mxu0
    %v558 = vadd.f32 %v309, %v557
    %v559 = vpop.f32.mrf.mxu0
    %560 = vmatprep.mubr.f32.mxu0 0.0
    %v561 = vand.u32 %v73, 4294901760
    %562 = vmatmul.mubr.f32.gmra.mxu0 %v561
    %v563 = vpop.f32.mrf.mxu0
    %v564 = vadd.f32 %v319, %v563
    %v565 = vpop.f32.mrf.mxu0
    %566 = vmatprep.mubr.f32.mxu0 0.0
    %v567 = vand.u32 %v74, 4294901760
    %568 = vmatmul.mubr.f32.gmra.mxu0 %v567
    %v569 = vpop.f32.mrf.mxu0
    %v570 = vadd.f32 %v329, %v569
    %v571 = vpop.f32.mrf.mxu0
    %572 = vdwg.mxu0
    %573 = vmatprep.subr.mxu0 0.0
    %v574 = vand.u32 %v90, 4294901760
    %v575 = vsub.f32 %v90, %v574
    %576 = vmatpush1.msra.mxu0 %v575
    %577 = vmatprep.subr.mxu0 0.0
    %v578 = vand.u32 %v89, 4294901760
    %v579 = vsub.f32 %v89, %v578
    %580 = vmatpush1.msra.mxu0 %v579
    %581 = vmatprep.subr.mxu0 0.0
    %v582 = vand.u32 %v88, 4294901760
    %v583 = vsub.f32 %v88, %v582
    %584 = vmatpush1.msra.mxu0 %v583
    %585 = vmatprep.subr.mxu0 0.0
    %v586 = vand.u32 %v87, 4294901760
    %v587 = vsub.f32 %v87, %v586
    %588 = vmatpush1.msra.mxu0 %v587
    %589 = vmatprep.subr.mxu0 0.0
    %v590 = vand.u32 %v86, 4294901760
    %v591 = vsub.f32 %v86, %v590
    %592 = vmatpush1.msra.mxu0 %v591
    %593 = vmatprep.subr.mxu0 0.0
    %v594 = vand.u32 %v85, 4294901760
    %v595 = vsub.f32 %v85, %v594
    %596 = vmatpush1.msra.mxu0 %v595
    %597 = vmatprep.subr.mxu0 0.0
    %v598 = vand.u32 %v84, 4294901760
    %v599 = vsub.f32 %v84, %v598
    %600 = vmatpush1.msra.mxu0 %v599
    %601 = vmatprep.subr.mxu0 0.0
    %v602 = vand.u32 %v83, 4294901760
    %v603 = vsub.f32 %v83, %v602
    %604 = vmatpush1.msra.mxu0 %v603
    %605 = vmatprep.subr.mxu0 0.0
    %v606 = vand.u32 %v82, 4294901760
    %v607 = vsub.f32 %v82, %v606
    %608 = vmatpush1.msra.mxu0 %v607
    %609 = vmatprep.subr.mxu0 0.0
    %v610 = vand.u32 %v81, 4294901760
    %v611 = vsub.f32 %v81, %v610
    %612 = vmatpush1.msra.mxu0 %v611
    %613 = vmatprep.subr.mxu0 0.0
    %v614 = vand.u32 %v80, 4294901760
    %v615 = vsub.f32 %v80, %v614
    %616 = vmatpush1.msra.mxu0 %v615
    %617 = vmatprep.subr.mxu0 0.0
    %v618 = vand.u32 %v79, 4294901760
    %v619 = vsub.f32 %v79, %v618
    %620 = vmatpush1.msra.mxu0 %v619
    %621 = vmatprep.subr.mxu0 0.0
    %v622 = vand.u32 %v78, 4294901760
    %v623 = vsub.f32 %v78, %v622
    %624 = vmatpush1.msra.mxu0 %v623
    %625 = vmatprep.subr.mxu0 0.0
    %v626 = vand.u32 %v77, 4294901760
    %v627 = vsub.f32 %v77, %v626
    %628 = vmatpush1.msra.mxu0 %v627
    %629 = vmatprep.subr.mxu0 0.0
    %v630 = vand.u32 %v76, 4294901760
    %v631 = vsub.f32 %v76, %v630
    %632 = vmatpush1.msra.mxu0 %v631
    %633 = vmatprep.subr.mxu0 0.0
    %v634 = vand.u32 %v75, 4294901760
    %v635 = vsub.f32 %v75, %v634
    %636 = vmatpush1.msra.mxu0 %v635
    %637 = vmatprep.subr.mxu0 0.0
    %638 = vmatpush2.msra.mxu0 0.0
    %639 = vmatprep.subr.mxu0 0.0
    %640 = vmatpush2.msra.mxu0 0.0
    %641 = vmatprep.subr.mxu0 0.0
    %642 = vmatpush2.msra.mxu0 0.0
    %643 = vmatprep.subr.mxu0 0.0
    %644 = vmatpush2.msra.mxu0 0.0
    %645 = vmatprep.subr.mxu0 0.0
    %646 = vmatpush2.msra.mxu0 0.0
    %647 = vmatprep.subr.mxu0 0.0
    %648 = vmatpush2.msra.mxu0 0.0
    %649 = vmatprep.subr.mxu0 0.0
    %650 = vmatpush2.msra.mxu0 0.0
    %651 = vmatprep.subr.mxu0 0.0
    %652 = vmatpush2.msra.mxu0 0.0
    %653 = vmatprep.subr.mxu0 0.0
    %654 = vmatpush2.msra.mxu0 0.0
    %655 = vmatprep.subr.mxu0 0.0
    %656 = vmatpush2.msra.mxu0 0.0
    %657 = vmatprep.subr.mxu0 0.0
    %658 = vmatpush2.msra.mxu0 0.0
    %659 = vmatprep.subr.mxu0 0.0
    %660 = vmatpush2.msra.mxu0 0.0
    %661 = vmatprep.subr.mxu0 0.0
    %662 = vmatpush2.msra.mxu0 0.0
    %663 = vmatprep.subr.mxu0 0.0
    %664 = vmatpush2.msra.mxu0 0.0
    %665 = vmatprep.subr.mxu0 0.0
    %666 = vmatpush2.msra.mxu0 0.0
    %667 = vmatprep.subr.mxu0 0.0
    %668 = vmatpush2.msra.mxu0 0.0
    %669 = vmatprep.mubr.f32.mxu0 0.0
    %v670 = vand.u32 %v59, 4294901760
    %v671 = vsub.f32 %v59, %v670
    %672 = vmatmul.mubr.f32.gmra.mxu0 %v671
    %v673 = vpop.f32.mrf.mxu0
    %v674 = vadd.f32 %v480, %v673
    %v675 = vpop.f32.mrf.mxu0
    %676 = vmatprep.mubr.f32.mxu0 0.0
    %v677 = vand.u32 %v60, 4294901760
    %v678 = vsub.f32 %v60, %v677
    %679 = vmatmul.mubr.f32.gmra.mxu0 %v678
    %v680 = vpop.f32.mrf.mxu0
    %v681 = vadd.f32 %v486, %v680
    %v682 = vpop.f32.mrf.mxu0
    %683 = vmatprep.mubr.f32.mxu0 0.0
    %v684 = vand.u32 %v61, 4294901760
    %v685 = vsub.f32 %v61, %v684
    %686 = vmatmul.mubr.f32.gmra.mxu0 %v685
    %v687 = vpop.f32.mrf.mxu0
    %v688 = vadd.f32 %v492, %v687
    %v689 = vpop.f32.mrf.mxu0
    %690 = vmatprep.mubr.f32.mxu0 0.0
    %v691 = vand.u32 %v62, 4294901760
    %v692 = vsub.f32 %v62, %v691
    %693 = vmatmul.mubr.f32.gmra.mxu0 %v692
    %v694 = vpop.f32.mrf.mxu0
    %v695 = vadd.f32 %v498, %v694
    %v696 = vpop.f32.mrf.mxu0
    %697 = vmatprep.mubr.f32.mxu0 0.0
    %v698 = vand.u32 %v63, 4294901760
    %v699 = vsub.f32 %v63, %v698
    %700 = vmatmul.mubr.f32.gmra.mxu0 %v699
    %v701 = vpop.f32.mrf.mxu0
    %v702 = vadd.f32 %v504, %v701
    %v703 = vpop.f32.mrf.mxu0
    %704 = vmatprep.mubr.f32.mxu0 0.0
    %v705 = vand.u32 %v64, 4294901760
    %v706 = vsub.f32 %v64, %v705
    %707 = vmatmul.mubr.f32.gmra.mxu0 %v706
    %v708 = vpop.f32.mrf.mxu0
    %v709 = vadd.f32 %v510, %v708
    %v710 = vpop.f32.mrf.mxu0
    %711 = vmatprep.mubr.f32.mxu0 0.0
    %v712 = vand.u32 %v65, 4294901760
    %v713 = vsub.f32 %v65, %v712
    %714 = vmatmul.mubr.f32.gmra.mxu0 %v713
    %v715 = vpop.f32.mrf.mxu0
    %v716 = vadd.f32 %v516, %v715
    %v717 = vpop.f32.mrf.mxu0
    %718 = vmatprep.mubr.f32.mxu0 0.0
    %v719 = vand.u32 %v66, 4294901760
    %v720 = vsub.f32 %v66, %v719
    %721 = vmatmul.mubr.f32.gmra.mxu0 %v720
    %v722 = vpop.f32.mrf.mxu0
    %v723 = vadd.f32 %v522, %v722
    %v724 = vpop.f32.mrf.mxu0
    %725 = vmatprep.mubr.f32.mxu0 0.0
    %v726 = vand.u32 %v67, 4294901760
    %v727 = vsub.f32 %v67, %v726
    %728 = vmatmul.mubr.f32.gmra.mxu0 %v727
    %v729 = vpop.f32.mrf.mxu0
    %v730 = vadd.f32 %v528, %v729
    %v731 = vpop.f32.mrf.mxu0
    %732 = vmatprep.mubr.f32.mxu0 0.0
    %v733 = vand.u32 %v68, 4294901760
    %v734 = vsub.f32 %v68, %v733
    %735 = vmatmul.mubr.f32.gmra.mxu0 %v734
    %v736 = vpop.f32.mrf.mxu0
    %v737 = vadd.f32 %v534, %v736
    %v738 = vpop.f32.mrf.mxu0
    %739 = vmatprep.mubr.f32.mxu0 0.0
    %v740 = vand.u32 %v69, 4294901760
    %v741 = vsub.f32 %v69, %v740
    %742 = vmatmul.mubr.f32.gmra.mxu0 %v741
    %v743 = vpop.f32.mrf.mxu0
    %v744 = vadd.f32 %v540, %v743
    %v745 = vpop.f32.mrf.mxu0
    %746 = vmatprep.mubr.f32.mxu0 0.0
    %v747 = vand.u32 %v70, 4294901760
    %v748 = vsub.f32 %v70, %v747
    %749 = vmatmul.mubr.f32.gmra.mxu0 %v748
    %v750 = vpop.f32.mrf.mxu0
    %v751 = vadd.f32 %v546, %v750
    %v752 = vpop.f32.mrf.mxu0
    %753 = vmatprep.mubr.f32.mxu0 0.0
    %v754 = vand.u32 %v71, 4294901760
    %v755 = vsub.f32 %v71, %v754
    %756 = vmatmul.mubr.f32.gmra.mxu0 %v755
    %v757 = vpop.f32.mrf.mxu0
    %v758 = vadd.f32 %v552, %v757
    %v759 = vpop.f32.mrf.mxu0
    %760 = vmatprep.mubr.f32.mxu0 0.0
    %v761 = vand.u32 %v72, 4294901760
    %v762 = vsub.f32 %v72, %v761
    %763 = vmatmul.mubr.f32.gmra.mxu0 %v762
    %v764 = vpop.f32.mrf.mxu0
    %v765 = vadd.f32 %v558, %v764
    %v766 = vpop.f32.mrf.mxu0
    %767 = vmatprep.mubr.f32.mxu0 0.0
    %v768 = vand.u32 %v73, 4294901760
    %v769 = vsub.f32 %v73, %v768
    %770 = vmatmul.mubr.f32.gmra.mxu0 %v769
    %v771 = vpop.f32.mrf.mxu0
    %v772 = vadd.f32 %v564, %v771
    %v773 = vpop.f32.mrf.mxu0
    %774 = vmatprep.mubr.f32.mxu0 0.0
    %v775 = vand.u32 %v74, 4294901760
    %v776 = vsub.f32 %v74, %v775
    %777 = vmatmul.mubr.f32.gmra.mxu0 %v776
    %v778 = vpop.f32.mrf.mxu0
    %v779 = vadd.f32 %v570, %v778
    %v780 = vpop.f32.mrf.mxu0
    %781 = vdwg.mxu0
    %782 = vmatprep.subr.mxu0 0.0
    %v783 = vand.u32 %v90, 4294901760
    %784 = vmatpush1.msra.mxu0 %v783
    %785 = vmatprep.subr.mxu0 0.0
    %v786 = vand.u32 %v89, 4294901760
    %787 = vmatpush1.msra.mxu0 %v786
    %788 = vmatprep.subr.mxu0 0.0
    %v789 = vand.u32 %v88, 4294901760
    %790 = vmatpush1.msra.mxu0 %v789
    %791 = vmatprep.subr.mxu0 0.0
    %v792 = vand.u32 %v87, 4294901760
    %793 = vmatpush1.msra.mxu0 %v792
    %794 = vmatprep.subr.mxu0 0.0
    %v795 = vand.u32 %v86, 4294901760
    %796 = vmatpush1.msra.mxu0 %v795
    %797 = vmatprep.subr.mxu0 0.0
    %v798 = vand.u32 %v85, 4294901760
    %799 = vmatpush1.msra.mxu0 %v798
    %800 = vmatprep.subr.mxu0 0.0
    %v801 = vand.u32 %v84, 4294901760
    %802 = vmatpush1.msra.mxu0 %v801
    %803 = vmatprep.subr.mxu0 0.0
    %v804 = vand.u32 %v83, 4294901760
    %805 = vmatpush1.msra.mxu0 %v804
    %806 = vmatprep.subr.mxu0 0.0
    %v807 = vand.u32 %v82, 4294901760
    %808 = vmatpush1.msra.mxu0 %v807
    %809 = vmatprep.subr.mxu0 0.0
    %v810 = vand.u32 %v81, 4294901760
    %811 = vmatpush1.msra.mxu0 %v810
    %812 = vmatprep.subr.mxu0 0.0
    %v813 = vand.u32 %v80, 4294901760
    %814 = vmatpush1.msra.mxu0 %v813
    %815 = vmatprep.subr.mxu0 0.0
    %v816 = vand.u32 %v79, 4294901760
    %817 = vmatpush1.msra.mxu0 %v816
    %818 = vmatprep.subr.mxu0 0.0
    %v819 = vand.u32 %v78, 4294901760
    %820 = vmatpush1.msra.mxu0 %v819
    %821 = vmatprep.subr.mxu0 0.0
    %v822 = vand.u32 %v77, 4294901760
    %823 = vmatpush1.msra.mxu0 %v822
    %824 = vmatprep.subr.mxu0 0.0
    %v825 = vand.u32 %v76, 4294901760
    %826 = vmatpush1.msra.mxu0 %v825
    %827 = vmatprep.subr.mxu0 0.0
    %v828 = vand.u32 %v75, 4294901760
    %829 = vmatpush1.msra.mxu0 %v828
    %830 = vmatprep.subr.mxu0 0.0
    %831 = vmatpush2.msra.mxu0 0.0
    %832 = vmatprep.subr.mxu0 0.0
    %833 = vmatpush2.msra.mxu0 0.0
    %834 = vmatprep.subr.mxu0 0.0
    %835 = vmatpush2.msra.mxu0 0.0
    %836 = vmatprep.subr.mxu0 0.0
    %837 = vmatpush2.msra.mxu0 0.0
    %838 = vmatprep.subr.mxu0 0.0
    %839 = vmatpush2.msra.mxu0 0.0
    %840 = vmatprep.subr.mxu0 0.0
    %841 = vmatpush2.msra.mxu0 0.0
    %842 = vmatprep.subr.mxu0 0.0
    %843 = vmatpush2.msra.mxu0 0.0
    %844 = vmatprep.subr.mxu0 0.0
    %845 = vmatpush2.msra.mxu0 0.0
    %846 = vmatprep.subr.mxu0 0.0
    %847 = vmatpush2.msra.mxu0 0.0
    %848 = vmatprep.subr.mxu0 0.0
    %849 = vmatpush2.msra.mxu0 0.0
    %850 = vmatprep.subr.mxu0 0.0
    %851 = vmatpush2.msra.mxu0 0.0
    %852 = vmatprep.subr.mxu0 0.0
    %853 = vmatpush2.msra.mxu0 0.0
    %854 = vmatprep.subr.mxu0 0.0
    %855 = vmatpush2.msra.mxu0 0.0
    %856 = vmatprep.subr.mxu0 0.0
    %857 = vmatpush2.msra.mxu0 0.0
    %858 = vmatprep.subr.mxu0 0.0
    %859 = vmatpush2.msra.mxu0 0.0
    %860 = vmatprep.subr.mxu0 0.0
    %861 = vmatpush2.msra.mxu0 0.0
    %862 = vmatprep.mubr.f32.mxu0 0.0
    %v863 = vand.u32 %v59, 4294901760
    %v864 = vsub.f32 %v59, %v863
    %v865 = vand.u32 %v864, 4294901760
    %866 = vmatmul.mubr.f32.gmra.mxu0 %v865
    %v867 = vpop.f32.mrf.mxu0
    %v868 = vadd.f32 %v674, %v867
    %v869 = vpop.f32.mrf.mxu0
    %870 = vmatprep.mubr.f32.mxu0 0.0
    %v871 = vand.u32 %v60, 4294901760
    %v872 = vsub.f32 %v60, %v871
    %v873 = vand.u32 %v872, 4294901760
    %874 = vmatmul.mubr.f32.gmra.mxu0 %v873
    %v875 = vpop.f32.mrf.mxu0
    %v876 = vadd.f32 %v681, %v875
    %v877 = vpop.f32.mrf.mxu0
    %878 = vmatprep.mubr.f32.mxu0 0.0
    %v879 = vand.u32 %v61, 4294901760
    %v880 = vsub.f32 %v61, %v879
    %v881 = vand.u32 %v880, 4294901760
    %882 = vmatmul.mubr.f32.gmra.mxu0 %v881
    %v883 = vpop.f32.mrf.mxu0
    %v884 = vadd.f32 %v688, %v883
    %v885 = vpop.f32.mrf.mxu0
    %886 = vmatprep.mubr.f32.mxu0 0.0
    %v887 = vand.u32 %v62, 4294901760
    %v888 = vsub.f32 %v62, %v887
    %v889 = vand.u32 %v888, 4294901760
    %890 = vmatmul.mubr.f32.gmra.mxu0 %v889
    %v891 = vpop.f32.mrf.mxu0
    %v892 = vadd.f32 %v695, %v891
    %v893 = vpop.f32.mrf.mxu0
    %894 = vmatprep.mubr.f32.mxu0 0.0
    %v895 = vand.u32 %v63, 4294901760
    %v896 = vsub.f32 %v63, %v895
    %v897 = vand.u32 %v896, 4294901760
    %898 = vmatmul.mubr.f32.gmra.mxu0 %v897
    %v899 = vpop.f32.mrf.mxu0
    %v900 = vadd.f32 %v702, %v899
    %v901 = vpop.f32.mrf.mxu0
    %902 = vmatprep.mubr.f32.mxu0 0.0
    %v903 = vand.u32 %v64, 4294901760
    %v904 = vsub.f32 %v64, %v903
    %v905 = vand.u32 %v904, 4294901760
    %906 = vmatmul.mubr.f32.gmra.mxu0 %v905
    %v907 = vpop.f32.mrf.mxu0
    %v908 = vadd.f32 %v709, %v907
    %v909 = vpop.f32.mrf.mxu0
    %910 = vmatprep.mubr.f32.mxu0 0.0
    %v911 = vand.u32 %v65, 4294901760
    %v912 = vsub.f32 %v65, %v911
    %v913 = vand.u32 %v912, 4294901760
    %914 = vmatmul.mubr.f32.gmra.mxu0 %v913
    %v915 = vpop.f32.mrf.mxu0
    %v916 = vadd.f32 %v716, %v915
    %v917 = vpop.f32.mrf.mxu0
    %918 = vmatprep.mubr.f32.mxu0 0.0
    %v919 = vand.u32 %v66, 4294901760
    %v920 = vsub.f32 %v66, %v919
    %v921 = vand.u32 %v920, 4294901760
    %922 = vmatmul.mubr.f32.gmra.mxu0 %v921
    %v923 = vpop.f32.mrf.mxu0
    %v924 = vadd.f32 %v723, %v923
    %v925 = vpop.f32.mrf.mxu0
    %926 = vmatprep.mubr.f32.mxu0 0.0
    %v927 = vand.u32 %v67, 4294901760
    %v928 = vsub.f32 %v67, %v927
    %v929 = vand.u32 %v928, 4294901760
    %930 = vmatmul.mubr.f32.gmra.mxu0 %v929
    %v931 = vpop.f32.mrf.mxu0
    %v932 = vadd.f32 %v730, %v931
    %v933 = vpop.f32.mrf.mxu0
    %934 = vmatprep.mubr.f32.mxu0 0.0
    %v935 = vand.u32 %v68, 4294901760
    %v936 = vsub.f32 %v68, %v935
    %v937 = vand.u32 %v936, 4294901760
    %938 = vmatmul.mubr.f32.gmra.mxu0 %v937
    %v939 = vpop.f32.mrf.mxu0
    %v940 = vadd.f32 %v737, %v939
    %v941 = vpop.f32.mrf.mxu0
    %942 = vmatprep.mubr.f32.mxu0 0.0
    %v943 = vand.u32 %v69, 4294901760
    %v944 = vsub.f32 %v69, %v943
    %v945 = vand.u32 %v944, 4294901760
    %946 = vmatmul.mubr.f32.gmra.mxu0 %v945
    %v947 = vpop.f32.mrf.mxu0
    %v948 = vadd.f32 %v744, %v947
    %v949 = vpop.f32.mrf.mxu0
    %950 = vmatprep.mubr.f32.mxu0 0.0
    %v951 = vand.u32 %v70, 4294901760
    %v952 = vsub.f32 %v70, %v951
    %v953 = vand.u32 %v952, 4294901760
    %954 = vmatmul.mubr.f32.gmra.mxu0 %v953
    %v955 = vpop.f32.mrf.mxu0
    %v956 = vadd.f32 %v751, %v955
    %v957 = vpop.f32.mrf.mxu0
    %958 = vmatprep.mubr.f32.mxu0 0.0
    %v959 = vand.u32 %v71, 4294901760
    %v960 = vsub.f32 %v71, %v959
    %v961 = vand.u32 %v960, 4294901760
    %962 = vmatmul.mubr.f32.gmra.mxu0 %v961
    %v963 = vpop.f32.mrf.mxu0
    %v964 = vadd.f32 %v758, %v963
    %v965 = vpop.f32.mrf.mxu0
    %966 = vmatprep.mubr.f32.mxu0 0.0
    %v967 = vand.u32 %v72, 4294901760
    %v968 = vsub.f32 %v72, %v967
    %v969 = vand.u32 %v968, 4294901760
    %970 = vmatmul.mubr.f32.gmra.mxu0 %v969
    %v971 = vpop.f32.mrf.mxu0
    %v972 = vadd.f32 %v765, %v971
    %v973 = vpop.f32.mrf.mxu0
    %974 = vmatprep.mubr.f32.mxu0 0.0
    %v975 = vand.u32 %v73, 4294901760
    %v976 = vsub.f32 %v73, %v975
    %v977 = vand.u32 %v976, 4294901760
    %978 = vmatmul.mubr.f32.gmra.mxu0 %v977
    %v979 = vpop.f32.mrf.mxu0
    %v980 = vadd.f32 %v772, %v979
    %v981 = vpop.f32.mrf.mxu0
    %982 = vmatprep.mubr.f32.mxu0 0.0
    %v983 = vand.u32 %v74, 4294901760
    %v984 = vsub.f32 %v74, %v983
    %v985 = vand.u32 %v984, 4294901760
    %986 = vmatmul.mubr.f32.gmra.mxu0 %v985
    %v987 = vpop.f32.mrf.mxu0
    %v988 = vadd.f32 %v779, %v987
    %v989 = vpop.f32.mrf.mxu0
    %990 = vdwg.mxu0
    %991 = vmatprep.subr.mxu0 0.0
    %v992 = vand.u32 %v90, 4294901760
    %v993 = vsub.f32 %v90, %v992
    %v994 = vand.u32 %v993, 4294901760
    %995 = vmatpush1.msra.mxu0 %v994
    %996 = vmatprep.subr.mxu0 0.0
    %v997 = vand.u32 %v89, 4294901760
    %v998 = vsub.f32 %v89, %v997
    %v999 = vand.u32 %v998, 4294901760
    %1000 = vmatpush1.msra.mxu0 %v999
    %1001 = vmatprep.subr.mxu0 0.0
    %v1002 = vand.u32 %v88, 4294901760
    %v1003 = vsub.f32 %v88, %v1002
    %v1004 = vand.u32 %v1003, 4294901760
    %1005 = vmatpush1.msra.mxu0 %v1004
    %1006 = vmatprep.subr.mxu0 0.0
    %v1007 = vand.u32 %v87, 4294901760
    %v1008 = vsub.f32 %v87, %v1007
    %v1009 = vand.u32 %v1008, 4294901760
    %1010 = vmatpush1.msra.mxu0 %v1009
    %1011 = vmatprep.subr.mxu0 0.0
    %v1012 = vand.u32 %v86, 4294901760
    %v1013 = vsub.f32 %v86, %v1012
    %v1014 = vand.u32 %v1013, 4294901760
    %1015 = vmatpush1.msra.mxu0 %v1014
    %1016 = vmatprep.subr.mxu0 0.0
    %v1017 = vand.u32 %v85, 4294901760
    %v1018 = vsub.f32 %v85, %v1017
    %v1019 = vand.u32 %v1018, 4294901760
    %1020 = vmatpush1.msra.mxu0 %v1019
    %1021 = vmatprep.subr.mxu0 0.0
    %v1022 = vand.u32 %v84, 4294901760
    %v1023 = vsub.f32 %v84, %v1022
    %v1024 = vand.u32 %v1023, 4294901760
    %1025 = vmatpush1.msra.mxu0 %v1024
    %1026 = vmatprep.subr.mxu0 0.0
    %v1027 = vand.u32 %v83, 4294901760
    %v1028 = vsub.f32 %v83, %v1027
    %v1029 = vand.u32 %v1028, 4294901760
    %1030 = vmatpush1.msra.mxu0 %v1029
    %1031 = vmatprep.subr.mxu0 0.0
    %v1032 = vand.u32 %v82, 4294901760
    %v1033 = vsub.f32 %v82, %v1032
    %v1034 = vand.u32 %v1033, 4294901760
    %1035 = vmatpush1.msra.mxu0 %v1034
    %1036 = vmatprep.subr.mxu0 0.0
    %v1037 = vand.u32 %v81, 4294901760
    %v1038 = vsub.f32 %v81, %v1037
    %v1039 = vand.u32 %v1038, 4294901760
    %1040 = vmatpush1.msra.mxu0 %v1039
    %1041 = vmatprep.subr.mxu0 0.0
    %v1042 = vand.u32 %v80, 4294901760
    %v1043 = vsub.f32 %v80, %v1042
    %v1044 = vand.u32 %v1043, 4294901760
    %1045 = vmatpush1.msra.mxu0 %v1044
    %1046 = vmatprep.subr.mxu0 0.0
    %v1047 = vand.u32 %v79, 4294901760
    %v1048 = vsub.f32 %v79, %v1047
    %v1049 = vand.u32 %v1048, 4294901760
    %1050 = vmatpush1.msra.mxu0 %v1049
    %1051 = vmatprep.subr.mxu0 0.0
    %v1052 = vand.u32 %v78, 4294901760
    %v1053 = vsub.f32 %v78, %v1052
    %v1054 = vand.u32 %v1053, 4294901760
    %1055 = vmatpush1.msra.mxu0 %v1054
    %1056 = vmatprep.subr.mxu0 0.0
    %v1057 = vand.u32 %v77, 4294901760
    %v1058 = vsub.f32 %v77, %v1057
    %v1059 = vand.u32 %v1058, 4294901760
    %1060 = vmatpush1.msra.mxu0 %v1059
    %1061 = vmatprep.subr.mxu0 0.0
    %v1062 = vand.u32 %v76, 4294901760
    %v1063 = vsub.f32 %v76, %v1062
    %v1064 = vand.u32 %v1063, 4294901760
    %1065 = vmatpush1.msra.mxu0 %v1064
    %1066 = vmatprep.subr.mxu0 0.0
    %v1067 = vand.u32 %v75, 4294901760
    %v1068 = vsub.f32 %v75, %v1067
    %v1069 = vand.u32 %v1068, 4294901760
    %1070 = vmatpush1.msra.mxu0 %v1069
    %1071 = vmatprep.subr.mxu0 0.0
    %1072 = vmatpush2.msra.mxu0 0.0
    %1073 = vmatprep.subr.mxu0 0.0
    %1074 = vmatpush2.msra.mxu0 0.0
    %1075 = vmatprep.subr.mxu0 0.0
    %1076 = vmatpush2.msra.mxu0 0.0
    %1077 = vmatprep.subr.mxu0 0.0
    %1078 = vmatpush2.msra.mxu0 0.0
    %1079 = vmatprep.subr.mxu0 0.0
    %1080 = vmatpush2.msra.mxu0 0.0
    %1081 = vmatprep.subr.mxu0 0.0
    %1082 = vmatpush2.msra.mxu0 0.0
    %1083 = vmatprep.subr.mxu0 0.0
    %1084 = vmatpush2.msra.mxu0 0.0
    %1085 = vmatprep.subr.mxu0 0.0
    %1086 = vmatpush2.msra.mxu0 0.0
    %1087 = vmatprep.subr.mxu0 0.0
    %1088 = vmatpush2.msra.mxu0 0.0
    %1089 = vmatprep.subr.mxu0 0.0
    %1090 = vmatpush2.msra.mxu0 0.0
    %1091 = vmatprep.subr.mxu0 0.0
    %1092 = vmatpush2.msra.mxu0 0.0
    %1093 = vmatprep.subr.mxu0 0.0
    %1094 = vmatpush2.msra.mxu0 0.0
    %1095 = vmatprep.subr.mxu0 0.0
    %1096 = vmatpush2.msra.mxu0 0.0
    %1097 = vmatprep.subr.mxu0 0.0
    %1098 = vmatpush2.msra.mxu0 0.0
    %1099 = vmatprep.subr.mxu0 0.0
    %1100 = vmatpush2.msra.mxu0 0.0
    %1101 = vmatprep.subr.mxu0 0.0
    %1102 = vmatpush2.msra.mxu0 0.0
    %1103 = vmatprep.mubr.f32.mxu0 0.0
    %v1104 = vand.u32 %v59, 4294901760
    %1105 = vmatmul.mubr.f32.gmra.mxu0 %v1104
    %v1106 = vpop.f32.mrf.mxu0
    %v1107 = vadd.f32 %v868, %v1106
    %v1108 = vpop.f32.mrf.mxu0
    %1109 = vmatprep.mubr.f32.mxu0 0.0
    %v1110 = vand.u32 %v60, 4294901760
    %1111 = vmatmul.mubr.f32.gmra.mxu0 %v1110
    %v1112 = vpop.f32.mrf.mxu0
    %v1113 = vadd.f32 %v876, %v1112
    %v1114 = vpop.f32.mrf.mxu0
    %1115 = vmatprep.mubr.f32.mxu0 0.0
    %v1116 = vand.u32 %v61, 4294901760
    %1117 = vmatmul.mubr.f32.gmra.mxu0 %v1116
    %v1118 = vpop.f32.mrf.mxu0
    %v1119 = vadd.f32 %v884, %v1118
    %v1120 = vpop.f32.mrf.mxu0
    %1121 = vmatprep.mubr.f32.mxu0 0.0
    %v1122 = vand.u32 %v62, 4294901760
    %1123 = vmatmul.mubr.f32.gmra.mxu0 %v1122
    %v1124 = vpop.f32.mrf.mxu0
    %v1125 = vadd.f32 %v892, %v1124
    %v1126 = vpop.f32.mrf.mxu0
    %1127 = vmatprep.mubr.f32.mxu0 0.0
    %v1128 = vand.u32 %v63, 4294901760
    %1129 = vmatmul.mubr.f32.gmra.mxu0 %v1128
    %v1130 = vpop.f32.mrf.mxu0
    %v1131 = vadd.f32 %v900, %v1130
    %v1132 = vpop.f32.mrf.mxu0
    %1133 = vmatprep.mubr.f32.mxu0 0.0
    %v1134 = vand.u32 %v64, 4294901760
    %1135 = vmatmul.mubr.f32.gmra.mxu0 %v1134
    %v1136 = vpop.f32.mrf.mxu0
    %v1137 = vadd.f32 %v908, %v1136
    %v1138 = vpop.f32.mrf.mxu0
    %1139 = vmatprep.mubr.f32.mxu0 0.0
    %v1140 = vand.u32 %v65, 4294901760
    %1141 = vmatmul.mubr.f32.gmra.mxu0 %v1140
    %v1142 = vpop.f32.mrf.mxu0
    %v1143 = vadd.f32 %v916, %v1142
    %v1144 = vpop.f32.mrf.mxu0
    %1145 = vmatprep.mubr.f32.mxu0 0.0
    %v1146 = vand.u32 %v66, 4294901760
    %1147 = vmatmul.mubr.f32.gmra.mxu0 %v1146
    %v1148 = vpop.f32.mrf.mxu0
    %v1149 = vadd.f32 %v924, %v1148
    %v1150 = vpop.f32.mrf.mxu0
    %1151 = vmatprep.mubr.f32.mxu0 0.0
    %v1152 = vand.u32 %v67, 4294901760
    %1153 = vmatmul.mubr.f32.gmra.mxu0 %v1152
    %v1154 = vpop.f32.mrf.mxu0
    %v1155 = vadd.f32 %v932, %v1154
    %v1156 = vpop.f32.mrf.mxu0
    %1157 = vmatprep.mubr.f32.mxu0 0.0
    %v1158 = vand.u32 %v68, 4294901760
    %1159 = vmatmul.mubr.f32.gmra.mxu0 %v1158
    %v1160 = vpop.f32.mrf.mxu0
    %v1161 = vadd.f32 %v940, %v1160
    %v1162 = vpop.f32.mrf.mxu0
    %1163 = vmatprep.mubr.f32.mxu0 0.0
    %v1164 = vand.u32 %v69, 4294901760
    %1165 = vmatmul.mubr.f32.gmra.mxu0 %v1164
    %v1166 = vpop.f32.mrf.mxu0
    %v1167 = vadd.f32 %v948, %v1166
    %v1168 = vpop.f32.mrf.mxu0
    %1169 = vmatprep.mubr.f32.mxu0 0.0
    %v1170 = vand.u32 %v70, 4294901760
    %1171 = vmatmul.mubr.f32.gmra.mxu0 %v1170
    %v1172 = vpop.f32.mrf.mxu0
    %v1173 = vadd.f32 %v956, %v1172
    %v1174 = vpop.f32.mrf.mxu0
    %1175 = vmatprep.mubr.f32.mxu0 0.0
    %v1176 = vand.u32 %v71, 4294901760
    %1177 = vmatmul.mubr.f32.gmra.mxu0 %v1176
    %v1178 = vpop.f32.mrf.mxu0
    %v1179 = vadd.f32 %v964, %v1178
    %v1180 = vpop.f32.mrf.mxu0
    %1181 = vmatprep.mubr.f32.mxu0 0.0
    %v1182 = vand.u32 %v72, 4294901760
    %1183 = vmatmul.mubr.f32.gmra.mxu0 %v1182
    %v1184 = vpop.f32.mrf.mxu0
    %v1185 = vadd.f32 %v972, %v1184
    %v1186 = vpop.f32.mrf.mxu0
    %1187 = vmatprep.mubr.f32.mxu0 0.0
    %v1188 = vand.u32 %v73, 4294901760
    %1189 = vmatmul.mubr.f32.gmra.mxu0 %v1188
    %v1190 = vpop.f32.mrf.mxu0
    %v1191 = vadd.f32 %v980, %v1190
    %v1192 = vpop.f32.mrf.mxu0
    %1193 = vmatprep.mubr.f32.mxu0 0.0
    %v1194 = vand.u32 %v74, 4294901760
    %1195 = vmatmul.mubr.f32.gmra.mxu0 %v1194
    %v1196 = vpop.f32.mrf.mxu0
    %v1197 = vadd.f32 %v988, %v1196
    %v1198 = vpop.f32.mrf.mxu0
    %1199 = vdwg.mxu0
    %1200 = vmatprep.subr.mxu0 0.0
    %v1201 = vand.u32 %v90, 4294901760
    %1202 = vmatpush1.msra.mxu0 %v1201
    %1203 = vmatprep.subr.mxu0 0.0
    %v1204 = vand.u32 %v89, 4294901760
    %1205 = vmatpush1.msra.mxu0 %v1204
    %1206 = vmatprep.subr.mxu0 0.0
    %v1207 = vand.u32 %v88, 4294901760
    %1208 = vmatpush1.msra.mxu0 %v1207
    %1209 = vmatprep.subr.mxu0 0.0
    %v1210 = vand.u32 %v87, 4294901760
    %1211 = vmatpush1.msra.mxu0 %v1210
    %1212 = vmatprep.subr.mxu0 0.0
    %v1213 = vand.u32 %v86, 4294901760
    %1214 = vmatpush1.msra.mxu0 %v1213
    %1215 = vmatprep.subr.mxu0 0.0
    %v1216 = vand.u32 %v85, 4294901760
    %1217 = vmatpush1.msra.mxu0 %v1216
    %1218 = vmatprep.subr.mxu0 0.0
    %v1219 = vand.u32 %v84, 4294901760
    %1220 = vmatpush1.msra.mxu0 %v1219
    %1221 = vmatprep.subr.mxu0 0.0
    %v1222 = vand.u32 %v83, 4294901760
    %1223 = vmatpush1.msra.mxu0 %v1222
    %1224 = vmatprep.subr.mxu0 0.0
    %v1225 = vand.u32 %v82, 4294901760
    %1226 = vmatpush1.msra.mxu0 %v1225
    %1227 = vmatprep.subr.mxu0 0.0
    %v1228 = vand.u32 %v81, 4294901760
    %1229 = vmatpush1.msra.mxu0 %v1228
    %1230 = vmatprep.subr.mxu0 0.0
    %v1231 = vand.u32 %v80, 4294901760
    %1232 = vmatpush1.msra.mxu0 %v1231
    %1233 = vmatprep.subr.mxu0 0.0
    %v1234 = vand.u32 %v79, 4294901760
    %1235 = vmatpush1.msra.mxu0 %v1234
    %1236 = vmatprep.subr.mxu0 0.0
    %v1237 = vand.u32 %v78, 4294901760
    %1238 = vmatpush1.msra.mxu0 %v1237
    %1239 = vmatprep.subr.mxu0 0.0
    %v1240 = vand.u32 %v77, 4294901760
    %1241 = vmatpush1.msra.mxu0 %v1240
    %1242 = vmatprep.subr.mxu0 0.0
    %v1243 = vand.u32 %v76, 4294901760
    %1244 = vmatpush1.msra.mxu0 %v1243
    %1245 = vmatprep.subr.mxu0 0.0
    %v1246 = vand.u32 %v75, 4294901760
    %1247 = vmatpush1.msra.mxu0 %v1246
    %1248 = vmatprep.subr.mxu0 0.0
    %1249 = vmatpush2.msra.mxu0 0.0
    %1250 = vmatprep.subr.mxu0 0.0
    %1251 = vmatpush2.msra.mxu0 0.0
    %1252 = vmatprep.subr.mxu0 0.0
    %1253 = vmatpush2.msra.mxu0 0.0
    %1254 = vmatprep.subr.mxu0 0.0
    %1255 = vmatpush2.msra.mxu0 0.0
    %1256 = vmatprep.subr.mxu0 0.0
    %1257 = vmatpush2.msra.mxu0 0.0
    %1258 = vmatprep.subr.mxu0 0.0
    %1259 = vmatpush2.msra.mxu0 0.0
    %1260 = vmatprep.subr.mxu0 0.0
    %1261 = vmatpush2.msra.mxu0 0.0
    %1262 = vmatprep.subr.mxu0 0.0
    %1263 = vmatpush2.msra.mxu0 0.0
    %1264 = vmatprep.subr.mxu0 0.0
    %1265 = vmatpush2.msra.mxu0 0.0
    %1266 = vmatprep.subr.mxu0 0.0
    %1267 = vmatpush2.msra.mxu0 0.0
    %1268 = vmatprep.subr.mxu0 0.0
    %1269 = vmatpush2.msra.mxu0 0.0
    %1270 = vmatprep.subr.mxu0 0.0
    %1271 = vmatpush2.msra.mxu0 0.0
    %1272 = vmatprep.subr.mxu0 0.0
    %1273 = vmatpush2.msra.mxu0 0.0
    %1274 = vmatprep.subr.mxu0 0.0
    %1275 = vmatpush2.msra.mxu0 0.0
    %1276 = vmatprep.subr.mxu0 0.0
    %1277 = vmatpush2.msra.mxu0 0.0
    %1278 = vmatprep.subr.mxu0 0.0
    %1279 = vmatpush2.msra.mxu0 0.0
    %1280 = vmatprep.mubr.f32.mxu0 0.0
    %v1281 = vand.u32 %v59, 4294901760
    %1282 = vmatmul.mubr.f32.gmra.mxu0 %v1281
    %v1283 = vpop.f32.mrf.mxu0
    %v1284 = vadd.f32 %v1107, %v1283
    %v1285 = vpop.f32.mrf.mxu0
    %1286 = vmatprep.mubr.f32.mxu0 0.0
    %v1287 = vand.u32 %v60, 4294901760
    %1288 = vmatmul.mubr.f32.gmra.mxu0 %v1287
    %v1289 = vpop.f32.mrf.mxu0
    %v1290 = vadd.f32 %v1113, %v1289
    %v1291 = vpop.f32.mrf.mxu0
    %1292 = vmatprep.mubr.f32.mxu0 0.0
    %v1293 = vand.u32 %v61, 4294901760
    %1294 = vmatmul.mubr.f32.gmra.mxu0 %v1293
    %v1295 = vpop.f32.mrf.mxu0
    %v1296 = vadd.f32 %v1119, %v1295
    %v1297 = vpop.f32.mrf.mxu0
    %1298 = vmatprep.mubr.f32.mxu0 0.0
    %v1299 = vand.u32 %v62, 4294901760
    %1300 = vmatmul.mubr.f32.gmra.mxu0 %v1299
    %v1301 = vpop.f32.mrf.mxu0
    %v1302 = vadd.f32 %v1125, %v1301
    %v1303 = vpop.f32.mrf.mxu0
    %1304 = vmatprep.mubr.f32.mxu0 0.0
    %v1305 = vand.u32 %v63, 4294901760
    %1306 = vmatmul.mubr.f32.gmra.mxu0 %v1305
    %v1307 = vpop.f32.mrf.mxu0
    %v1308 = vadd.f32 %v1131, %v1307
    %v1309 = vpop.f32.mrf.mxu0
    %1310 = vmatprep.mubr.f32.mxu0 0.0
    %v1311 = vand.u32 %v64, 4294901760
    %1312 = vmatmul.mubr.f32.gmra.mxu0 %v1311
    %v1313 = vpop.f32.mrf.mxu0
    %v1314 = vadd.f32 %v1137, %v1313
    %v1315 = vpop.f32.mrf.mxu0
    %1316 = vmatprep.mubr.f32.mxu0 0.0
    %v1317 = vand.u32 %v65, 4294901760
    %1318 = vmatmul.mubr.f32.gmra.mxu0 %v1317
    %v1319 = vpop.f32.mrf.mxu0
    %v1320 = vadd.f32 %v1143, %v1319
    %v1321 = vpop.f32.mrf.mxu0
    %1322 = vmatprep.mubr.f32.mxu0 0.0
    %v1323 = vand.u32 %v66, 4294901760
    %1324 = vmatmul.mubr.f32.gmra.mxu0 %v1323
    %v1325 = vpop.f32.mrf.mxu0
    %v1326 = vadd.f32 %v1149, %v1325
    %v1327 = vpop.f32.mrf.mxu0
    %1328 = vmatprep.mubr.f32.mxu0 0.0
    %v1329 = vand.u32 %v67, 4294901760
    %1330 = vmatmul.mubr.f32.gmra.mxu0 %v1329
    %v1331 = vpop.f32.mrf.mxu0
    %v1332 = vadd.f32 %v1155, %v1331
    %v1333 = vpop.f32.mrf.mxu0
    %1334 = vmatprep.mubr.f32.mxu0 0.0
    %v1335 = vand.u32 %v68, 4294901760
    %1336 = vmatmul.mubr.f32.gmra.mxu0 %v1335
    %v1337 = vpop.f32.mrf.mxu0
    %v1338 = vadd.f32 %v1161, %v1337
    %v1339 = vpop.f32.mrf.mxu0
    %1340 = vmatprep.mubr.f32.mxu0 0.0
    %v1341 = vand.u32 %v69, 4294901760
    %1342 = vmatmul.mubr.f32.gmra.mxu0 %v1341
    %v1343 = vpop.f32.mrf.mxu0
    %v1344 = vadd.f32 %v1167, %v1343
    %v1345 = vpop.f32.mrf.mxu0
    %1346 = vmatprep.mubr.f32.mxu0 0.0
    %v1347 = vand.u32 %v70, 4294901760
    %1348 = vmatmul.mubr.f32.gmra.mxu0 %v1347
    %v1349 = vpop.f32.mrf.mxu0
    %v1350 = vadd.f32 %v1173, %v1349
    %v1351 = vpop.f32.mrf.mxu0
    %1352 = vmatprep.mubr.f32.mxu0 0.0
    %v1353 = vand.u32 %v71, 4294901760
    %1354 = vmatmul.mubr.f32.gmra.mxu0 %v1353
    %v1355 = vpop.f32.mrf.mxu0
    %v1356 = vadd.f32 %v1179, %v1355
    %v1357 = vpop.f32.mrf.mxu0
    %1358 = vmatprep.mubr.f32.mxu0 0.0
    %v1359 = vand.u32 %v72, 4294901760
    %1360 = vmatmul.mubr.f32.gmra.mxu0 %v1359
    %v1361 = vpop.f32.mrf.mxu0
    %v1362 = vadd.f32 %v1185, %v1361
    %v1363 = vpop.f32.mrf.mxu0
    %1364 = vmatprep.mubr.f32.mxu0 0.0
    %v1365 = vand.u32 %v73, 4294901760
    %1366 = vmatmul.mubr.f32.gmra.mxu0 %v1365
    %v1367 = vpop.f32.mrf.mxu0
    %v1368 = vadd.f32 %v1191, %v1367
    %v1369 = vpop.f32.mrf.mxu0
    %1370 = vmatprep.mubr.f32.mxu0 0.0
    %v1371 = vand.u32 %v74, 4294901760
    %1372 = vmatmul.mubr.f32.gmra.mxu0 %v1371
    %v1373 = vpop.f32.mrf.mxu0
    %v1374 = vadd.f32 %v1197, %v1373
    %v1375 = vpop.f32.mrf.mxu0
    %1376 = vdwg.mxu0
    %v1377 = vld [vmem:[#allocation7] sm:$0xff]
    %v1378 = vld [vmem:[#allocation7 + $0x8] sm:$0xff]
    %v1379 = vld [vmem:[#allocation7 + $0x10] sm:$0xff]
    %v1380 = vld [vmem:[#allocation7 + $0x18] sm:$0xff]
    %v1381 = vld [vmem:[#allocation7 + $0x20] sm:$0xff]
    %v1382 = vld [vmem:[#allocation7 + $0x28] sm:$0xff]
    %v1383 = vld [vmem:[#allocation7 + $0x30] sm:$0xff]
    %v1384 = vld [vmem:[#allocation7 + $0x38] sm:$0xff]
    %v1385 = vld [vmem:[#allocation7 + $0x40] sm:$0xff]
    %v1386 = vld [vmem:[#allocation7 + $0x48] sm:$0xff]
    %v1387 = vld [vmem:[#allocation7 + $0x50] sm:$0xff]
    %v1388 = vld [vmem:[#allocation7 + $0x58] sm:$0xff]
    %v1389 = vld [vmem:[#allocation7 + $0x60] sm:$0xff]
    %v1390 = vld [vmem:[#allocation7 + $0x68] sm:$0xff]
    %v1391 = vld [vmem:[#allocation7 + $0x70] sm:$0xff]
    %v1392 = vld [vmem:[#allocation7 + $0x78] sm:$0xff]
    %v1393 = vld [vmem:[%s3] sm:$0x1]
    %v1395 = vlaneseq
    %v1396 = vshrl.u32 %v1395, 7
    %v1397 = vsub.s32 0, %v1396
    %v1398 = vrot.slane %v1393, %v1397
    %1400 = vmatprep.subr.mxu0 0.0
    %v1401 = vand.u32 %v1392, 4294901760
    %1402 = vmatpush1.msra.mxu0 %v1401
    %1403 = vmatprep.subr.mxu0 0.0
    %v1404 = vand.u32 %v1391, 4294901760
    %1405 = vmatpush1.msra.mxu0 %v1404
    %1406 = vmatprep.subr.mxu0 0.0
    %v1407 = vand.u32 %v1390, 4294901760
    %1408 = vmatpush1.msra.mxu0 %v1407
    %1409 = vmatprep.subr.mxu0 0.0
    %v1410 = vand.u32 %v1389, 4294901760
    %1411 = vmatpush1.msra.mxu0 %v1410
    %1412 = vmatprep.subr.mxu0 0.0
    %v1413 = vand.u32 %v1388, 4294901760
    %1414 = vmatpush1.msra.mxu0 %v1413
    %1415 = vmatprep.subr.mxu0 0.0
    %v1416 = vand.u32 %v1387, 4294901760
    %1417 = vmatpush1.msra.mxu0 %v1416
    %1418 = vmatprep.subr.mxu0 0.0
    %v1419 = vand.u32 %v1386, 4294901760
    %1420 = vmatpush1.msra.mxu0 %v1419
    %1421 = vmatprep.subr.mxu0 0.0
    %v1422 = vand.u32 %v1385, 4294901760
    %1423 = vmatpush1.msra.mxu0 %v1422
    %1424 = vmatprep.subr.mxu0 0.0
    %v1425 = vand.u32 %v1384, 4294901760
    %1426 = vmatpush1.msra.mxu0 %v1425
    %1427 = vmatprep.subr.mxu0 0.0
    %v1428 = vand.u32 %v1383, 4294901760
    %1429 = vmatpush1.msra.mxu0 %v1428
    %1430 = vmatprep.subr.mxu0 0.0
    %v1431 = vand.u32 %v1382, 4294901760
    %1432 = vmatpush1.msra.mxu0 %v1431
    %1433 = vmatprep.subr.mxu0 0.0
    %v1434 = vand.u32 %v1381, 4294901760
    %1435 = vmatpush1.msra.mxu0 %v1434
    %1436 = vmatprep.subr.mxu0 0.0
    %v1437 = vand.u32 %v1380, 4294901760
    %1438 = vmatpush1.msra.mxu0 %v1437
    %1439 = vmatprep.subr.mxu0 0.0
    %v1440 = vand.u32 %v1379, 4294901760
    %1441 = vmatpush1.msra.mxu0 %v1440
    %1442 = vmatprep.subr.mxu0 0.0
    %v1443 = vand.u32 %v1378, 4294901760
    %1444 = vmatpush1.msra.mxu0 %v1443
    %1445 = vmatprep.subr.mxu0 0.0
    %v1446 = vand.u32 %v1377, 4294901760
    %1447 = vmatpush1.msra.mxu0 %v1446
    %1448 = vmatprep.subr.mxu0 0.0
    %1449 = vmatpush2.msra.mxu0 0.0
    %1450 = vmatprep.subr.mxu0 0.0
    %1451 = vmatpush2.msra.mxu0 0.0
    %1452 = vmatprep.subr.mxu0 0.0
    %1453 = vmatpush2.msra.mxu0 0.0
    %1454 = vmatprep.subr.mxu0 0.0
    %1455 = vmatpush2.msra.mxu0 0.0
    %1456 = vmatprep.subr.mxu0 0.0
    %1457 = vmatpush2.msra.mxu0 0.0
    %1458 = vmatprep.subr.mxu0 0.0
    %1459 = vmatpush2.msra.mxu0 0.0
    %1460 = vmatprep.subr.mxu0 0.0
    %1461 = vmatpush2.msra.mxu0 0.0
    %1462 = vmatprep.subr.mxu0 0.0
    %1463 = vmatpush2.msra.mxu0 0.0
    %1464 = vmatprep.subr.mxu0 0.0
    %1465 = vmatpush2.msra.mxu0 0.0
    %1466 = vmatprep.subr.mxu0 0.0
    %1467 = vmatpush2.msra.mxu0 0.0
    %1468 = vmatprep.subr.mxu0 0.0
    %1469 = vmatpush2.msra.mxu0 0.0
    %1470 = vmatprep.subr.mxu0 0.0
    %1471 = vmatpush2.msra.mxu0 0.0
    %1472 = vmatprep.subr.mxu0 0.0
    %1473 = vmatpush2.msra.mxu0 0.0
    %1474 = vmatprep.subr.mxu0 0.0
    %1475 = vmatpush2.msra.mxu0 0.0
    %1476 = vmatprep.subr.mxu0 0.0
    %1477 = vmatpush2.msra.mxu0 0.0
    %1478 = vmatprep.subr.mxu0 0.0
    %1479 = vmatpush2.msra.mxu0 0.0
    %1480 = vmatprep.mubr.f32.mxu0 0.0
    %v1481 = vand.u32 %v1284, 4294901760
    %v1482 = vsub.f32 %v1284, %v1481
    %v1483 = vand.u32 %v1482, 4294901760
    %v1484 = vsub.f32 %v1482, %v1483
    %v1485 = vand.u32 %v1484, 4294901760
    %1486 = vmatmul.mubr.f32.gmra.mxu0 %v1485
    %v1487 = vpop.f32.mrf.mxu0
    %v1488 = vadd.f32 %v1398, %v1487
    %v1489 = vpop.f32.mrf.mxu0
    %1490 = vmatprep.mubr.f32.mxu0 0.0
    %v1491 = vand.u32 %v1290, 4294901760
    %v1492 = vsub.f32 %v1290, %v1491
    %v1493 = vand.u32 %v1492, 4294901760
    %v1494 = vsub.f32 %v1492, %v1493
    %v1495 = vand.u32 %v1494, 4294901760
    %1496 = vmatmul.mubr.f32.gmra.mxu0 %v1495
    %v1497 = vpop.f32.mrf.mxu0
    %v1498 = vadd.f32 %v1398, %v1497
    %v1499 = vpop.f32.mrf.mxu0
    %1500 = vmatprep.mubr.f32.mxu0 0.0
    %v1501 = vand.u32 %v1296, 4294901760
    %v1502 = vsub.f32 %v1296, %v1501
    %v1503 = vand.u32 %v1502, 4294901760
    %v1504 = vsub.f32 %v1502, %v1503
    %v1505 = vand.u32 %v1504, 4294901760
    %1506 = vmatmul.mubr.f32.gmra.mxu0 %v1505
    %v1507 = vpop.f32.mrf.mxu0
    %v1508 = vadd.f32 %v1398, %v1507
    %v1509 = vpop.f32.mrf.mxu0
    %1510 = vmatprep.mubr.f32.mxu0 0.0
    %v1511 = vand.u32 %v1302, 4294901760
    %v1512 = vsub.f32 %v1302, %v1511
    %v1513 = vand.u32 %v1512, 4294901760
    %v1514 = vsub.f32 %v1512, %v1513
    %v1515 = vand.u32 %v1514, 4294901760
    %1516 = vmatmul.mubr.f32.gmra.mxu0 %v1515
    %v1517 = vpop.f32.mrf.mxu0
    %v1518 = vadd.f32 %v1398, %v1517
    %v1519 = vpop.f32.mrf.mxu0
    %1520 = vmatprep.mubr.f32.mxu0 0.0
    %v1521 = vand.u32 %v1308, 4294901760
    %v1522 = vsub.f32 %v1308, %v1521
    %v1523 = vand.u32 %v1522, 4294901760
    %v1524 = vsub.f32 %v1522, %v1523
    %v1525 = vand.u32 %v1524, 4294901760
    %1526 = vmatmul.mubr.f32.gmra.mxu0 %v1525
    %v1527 = vpop.f32.mrf.mxu0
    %v1528 = vadd.f32 %v1398, %v1527
    %v1529 = vpop.f32.mrf.mxu0
    %1530 = vmatprep.mubr.f32.mxu0 0.0
    %v1531 = vand.u32 %v1314, 4294901760
    %v1532 = vsub.f32 %v1314, %v1531
    %v1533 = vand.u32 %v1532, 4294901760
    %v1534 = vsub.f32 %v1532, %v1533
    %v1535 = vand.u32 %v1534, 4294901760
    %1536 = vmatmul.mubr.f32.gmra.mxu0 %v1535
    %v1537 = vpop.f32.mrf.mxu0
    %v1538 = vadd.f32 %v1398, %v1537
    %v1539 = vpop.f32.mrf.mxu0
    %1540 = vmatprep.mubr.f32.mxu0 0.0
    %v1541 = vand.u32 %v1320, 4294901760
    %v1542 = vsub.f32 %v1320, %v1541
    %v1543 = vand.u32 %v1542, 4294901760
    %v1544 = vsub.f32 %v1542, %v1543
    %v1545 = vand.u32 %v1544, 4294901760
    %1546 = vmatmul.mubr.f32.gmra.mxu0 %v1545
    %v1547 = vpop.f32.mrf.mxu0
    %v1548 = vadd.f32 %v1398, %v1547
    %v1549 = vpop.f32.mrf.mxu0
    %1550 = vmatprep.mubr.f32.mxu0 0.0
    %v1551 = vand.u32 %v1326, 4294901760
    %v1552 = vsub.f32 %v1326, %v1551
    %v1553 = vand.u32 %v1552, 4294901760
    %v1554 = vsub.f32 %v1552, %v1553
    %v1555 = vand.u32 %v1554, 4294901760
    %1556 = vmatmul.mubr.f32.gmra.mxu0 %v1555
    %v1557 = vpop.f32.mrf.mxu0
    %v1558 = vadd.f32 %v1398, %v1557
    %v1559 = vpop.f32.mrf.mxu0
    %1560 = vmatprep.mubr.f32.mxu0 0.0
    %v1561 = vand.u32 %v1332, 4294901760
    %v1562 = vsub.f32 %v1332, %v1561
    %v1563 = vand.u32 %v1562, 4294901760
    %v1564 = vsub.f32 %v1562, %v1563
    %v1565 = vand.u32 %v1564, 4294901760
    %1566 = vmatmul.mubr.f32.gmra.mxu0 %v1565
    %v1567 = vpop.f32.mrf.mxu0
    %v1568 = vadd.f32 %v1398, %v1567
    %v1569 = vpop.f32.mrf.mxu0
    %1570 = vmatprep.mubr.f32.mxu0 0.0
    %v1571 = vand.u32 %v1338, 4294901760
    %v1572 = vsub.f32 %v1338, %v1571
    %v1573 = vand.u32 %v1572, 4294901760
    %v1574 = vsub.f32 %v1572, %v1573
    %v1575 = vand.u32 %v1574, 4294901760
    %1576 = vmatmul.mubr.f32.gmra.mxu0 %v1575
    %v1577 = vpop.f32.mrf.mxu0
    %v1578 = vadd.f32 %v1398, %v1577
    %v1579 = vpop.f32.mrf.mxu0
    %1580 = vmatprep.mubr.f32.mxu0 0.0
    %v1581 = vand.u32 %v1344, 4294901760
    %v1582 = vsub.f32 %v1344, %v1581
    %v1583 = vand.u32 %v1582, 4294901760
    %v1584 = vsub.f32 %v1582, %v1583
    %v1585 = vand.u32 %v1584, 4294901760
    %1586 = vmatmul.mubr.f32.gmra.mxu0 %v1585
    %v1587 = vpop.f32.mrf.mxu0
    %v1588 = vadd.f32 %v1398, %v1587
    %v1589 = vpop.f32.mrf.mxu0
    %1590 = vmatprep.mubr.f32.mxu0 0.0
    %v1591 = vand.u32 %v1350, 4294901760
    %v1592 = vsub.f32 %v1350, %v1591
    %v1593 = vand.u32 %v1592, 4294901760
    %v1594 = vsub.f32 %v1592, %v1593
    %v1595 = vand.u32 %v1594, 4294901760
    %1596 = vmatmul.mubr.f32.gmra.mxu0 %v1595
    %v1597 = vpop.f32.mrf.mxu0
    %v1598 = vadd.f32 %v1398, %v1597
    %v1599 = vpop.f32.mrf.mxu0
    %1600 = vmatprep.mubr.f32.mxu0 0.0
    %v1601 = vand.u32 %v1356, 4294901760
    %v1602 = vsub.f32 %v1356, %v1601
    %v1603 = vand.u32 %v1602, 4294901760
    %v1604 = vsub.f32 %v1602, %v1603
    %v1605 = vand.u32 %v1604, 4294901760
    %1606 = vmatmul.mubr.f32.gmra.mxu0 %v1605
    %v1607 = vpop.f32.mrf.mxu0
    %v1608 = vadd.f32 %v1398, %v1607
    %v1609 = vpop.f32.mrf.mxu0
    %1610 = vmatprep.mubr.f32.mxu0 0.0
    %v1611 = vand.u32 %v1362, 4294901760
    %v1612 = vsub.f32 %v1362, %v1611
    %v1613 = vand.u32 %v1612, 4294901760
    %v1614 = vsub.f32 %v1612, %v1613
    %v1615 = vand.u32 %v1614, 4294901760
    %1616 = vmatmul.mubr.f32.gmra.mxu0 %v1615
    %v1617 = vpop.f32.mrf.mxu0
    %v1618 = vadd.f32 %v1398, %v1617
    %v1619 = vpop.f32.mrf.mxu0
    %1620 = vmatprep.mubr.f32.mxu0 0.0
    %v1621 = vand.u32 %v1368, 4294901760
    %v1622 = vsub.f32 %v1368, %v1621
    %v1623 = vand.u32 %v1622, 4294901760
    %v1624 = vsub.f32 %v1622, %v1623
    %v1625 = vand.u32 %v1624, 4294901760
    %1626 = vmatmul.mubr.f32.gmra.mxu0 %v1625
    %v1627 = vpop.f32.mrf.mxu0
    %v1628 = vadd.f32 %v1398, %v1627
    %v1629 = vpop.f32.mrf.mxu0
    %1630 = vmatprep.mubr.f32.mxu0 0.0
    %v1631 = vand.u32 %v1374, 4294901760
    %v1632 = vsub.f32 %v1374, %v1631
    %v1633 = vand.u32 %v1632, 4294901760
    %v1634 = vsub.f32 %v1632, %v1633
    %v1635 = vand.u32 %v1634, 4294901760
    %1636 = vmatmul.mubr.f32.gmra.mxu0 %v1635
    %v1637 = vpop.f32.mrf.mxu0
    %v1638 = vadd.f32 %v1398, %v1637
    %v1639 = vpop.f32.mrf.mxu0
    %1640 = vdwg.mxu0
    %1641 = vmatprep.subr.mxu0 0.0
    %v1642 = vand.u32 %v1392, 4294901760
    %v1643 = vsub.f32 %v1392, %v1642
    %v1644 = vand.u32 %v1643, 4294901760
    %v1645 = vsub.f32 %v1643, %v1644
    %v1646 = vand.u32 %v1645, 4294901760
    %1647 = vmatpush1.msra.mxu0 %v1646
    %1648 = vmatprep.subr.mxu0 0.0
    %v1649 = vand.u32 %v1391, 4294901760
    %v1650 = vsub.f32 %v1391, %v1649
    %v1651 = vand.u32 %v1650, 4294901760
    %v1652 = vsub.f32 %v1650, %v1651
    %v1653 = vand.u32 %v1652, 4294901760
    %1654 = vmatpush1.msra.mxu0 %v1653
    %1655 = vmatprep.subr.mxu0 0.0
    %v1656 = vand.u32 %v1390, 4294901760
    %v1657 = vsub.f32 %v1390, %v1656
    %v1658 = vand.u32 %v1657, 4294901760
    %v1659 = vsub.f32 %v1657, %v1658
    %v1660 = vand.u32 %v1659, 4294901760
    %1661 = vmatpush1.msra.mxu0 %v1660
    %1662 = vmatprep.subr.mxu0 0.0
    %v1663 = vand.u32 %v1389, 4294901760
    %v1664 = vsub.f32 %v1389, %v1663
    %v1665 = vand.u32 %v1664, 4294901760
    %v1666 = vsub.f32 %v1664, %v1665
    %v1667 = vand.u32 %v1666, 4294901760
    %1668 = vmatpush1.msra.mxu0 %v1667
    %1669 = vmatprep.subr.mxu0 0.0
    %v1670 = vand.u32 %v1388, 4294901760
    %v1671 = vsub.f32 %v1388, %v1670
    %v1672 = vand.u32 %v1671, 4294901760
    %v1673 = vsub.f32 %v1671, %v1672
    %v1674 = vand.u32 %v1673, 4294901760
    %1675 = vmatpush1.msra.mxu0 %v1674
    %1676 = vmatprep.subr.mxu0 0.0
    %v1677 = vand.u32 %v1387, 4294901760
    %v1678 = vsub.f32 %v1387, %v1677
    %v1679 = vand.u32 %v1678, 4294901760
    %v1680 = vsub.f32 %v1678, %v1679
    %v1681 = vand.u32 %v1680, 4294901760
    %1682 = vmatpush1.msra.mxu0 %v1681
    %1683 = vmatprep.subr.mxu0 0.0
    %v1684 = vand.u32 %v1386, 4294901760
    %v1685 = vsub.f32 %v1386, %v1684
    %v1686 = vand.u32 %v1685, 4294901760
    %v1687 = vsub.f32 %v1685, %v1686
    %v1688 = vand.u32 %v1687, 4294901760
    %1689 = vmatpush1.msra.mxu0 %v1688
    %1690 = vmatprep.subr.mxu0 0.0
    %v1691 = vand.u32 %v1385, 4294901760
    %v1692 = vsub.f32 %v1385, %v1691
    %v1693 = vand.u32 %v1692, 4294901760
    %v1694 = vsub.f32 %v1692, %v1693
    %v1695 = vand.u32 %v1694, 4294901760
    %1696 = vmatpush1.msra.mxu0 %v1695
    %1697 = vmatprep.subr.mxu0 0.0
    %v1698 = vand.u32 %v1384, 4294901760
    %v1699 = vsub.f32 %v1384, %v1698
    %v1700 = vand.u32 %v1699, 4294901760
    %v1701 = vsub.f32 %v1699, %v1700
    %v1702 = vand.u32 %v1701, 4294901760
    %1703 = vmatpush1.msra.mxu0 %v1702
    %1704 = vmatprep.subr.mxu0 0.0
    %v1705 = vand.u32 %v1383, 4294901760
    %v1706 = vsub.f32 %v1383, %v1705
    %v1707 = vand.u32 %v1706, 4294901760
    %v1708 = vsub.f32 %v1706, %v1707
    %v1709 = vand.u32 %v1708, 4294901760
    %1710 = vmatpush1.msra.mxu0 %v1709
    %1711 = vmatprep.subr.mxu0 0.0
    %v1712 = vand.u32 %v1382, 4294901760
    %v1713 = vsub.f32 %v1382, %v1712
    %v1714 = vand.u32 %v1713, 4294901760
    %v1715 = vsub.f32 %v1713, %v1714
    %v1716 = vand.u32 %v1715, 4294901760
    %1717 = vmatpush1.msra.mxu0 %v1716
    %1718 = vmatprep.subr.mxu0 0.0
    %v1719 = vand.u32 %v1381, 4294901760
    %v1720 = vsub.f32 %v1381, %v1719
    %v1721 = vand.u32 %v1720, 4294901760
    %v1722 = vsub.f32 %v1720, %v1721
    %v1723 = vand.u32 %v1722, 4294901760
    %1724 = vmatpush1.msra.mxu0 %v1723
    %1725 = vmatprep.subr.mxu0 0.0
    %v1726 = vand.u32 %v1380, 4294901760
    %v1727 = vsub.f32 %v1380, %v1726
    %v1728 = vand.u32 %v1727, 4294901760
    %v1729 = vsub.f32 %v1727, %v1728
    %v1730 = vand.u32 %v1729, 4294901760
    %1731 = vmatpush1.msra.mxu0 %v1730
    %1732 = vmatprep.subr.mxu0 0.0
    %v1733 = vand.u32 %v1379, 4294901760
    %v1734 = vsub.f32 %v1379, %v1733
    %v1735 = vand.u32 %v1734, 4294901760
    %v1736 = vsub.f32 %v1734, %v1735
    %v1737 = vand.u32 %v1736, 4294901760
    %1738 = vmatpush1.msra.mxu0 %v1737
    %1739 = vmatprep.subr.mxu0 0.0
    %v1740 = vand.u32 %v1378, 4294901760
    %v1741 = vsub.f32 %v1378, %v1740
    %v1742 = vand.u32 %v1741, 4294901760
    %v1743 = vsub.f32 %v1741, %v1742
    %v1744 = vand.u32 %v1743, 4294901760
    %1745 = vmatpush1.msra.mxu0 %v1744
    %1746 = vmatprep.subr.mxu0 0.0
    %v1747 = vand.u32 %v1377, 4294901760
    %v1748 = vsub.f32 %v1377, %v1747
    %v1749 = vand.u32 %v1748, 4294901760
    %v1750 = vsub.f32 %v1748, %v1749
    %v1751 = vand.u32 %v1750, 4294901760
    %1752 = vmatpush1.msra.mxu0 %v1751
    %1753 = vmatprep.subr.mxu0 0.0
    %1754 = vmatpush2.msra.mxu0 0.0
    %1755 = vmatprep.subr.mxu0 0.0
    %1756 = vmatpush2.msra.mxu0 0.0
    %1757 = vmatprep.subr.mxu0 0.0
    %1758 = vmatpush2.msra.mxu0 0.0
    %1759 = vmatprep.subr.mxu0 0.0
    %1760 = vmatpush2.msra.mxu0 0.0
    %1761 = vmatprep.subr.mxu0 0.0
    %1762 = vmatpush2.msra.mxu0 0.0
    %1763 = vmatprep.subr.mxu0 0.0
    %1764 = vmatpush2.msra.mxu0 0.0
    %1765 = vmatprep.subr.mxu0 0.0
    %1766 = vmatpush2.msra.mxu0 0.0
    %1767 = vmatprep.subr.mxu0 0.0
    %1768 = vmatpush2.msra.mxu0 0.0
    %1769 = vmatprep.subr.mxu0 0.0
    %1770 = vmatpush2.msra.mxu0 0.0
    %1771 = vmatprep.subr.mxu0 0.0
    %1772 = vmatpush2.msra.mxu0 0.0
    %1773 = vmatprep.subr.mxu0 0.0
    %1774 = vmatpush2.msra.mxu0 0.0
    %1775 = vmatprep.subr.mxu0 0.0
    %1776 = vmatpush2.msra.mxu0 0.0
    %1777 = vmatprep.subr.mxu0 0.0
    %1778 = vmatpush2.msra.mxu0 0.0
    %1779 = vmatprep.subr.mxu0 0.0
    %1780 = vmatpush2.msra.mxu0 0.0
    %1781 = vmatprep.subr.mxu0 0.0
    %1782 = vmatpush2.msra.mxu0 0.0
    %1783 = vmatprep.subr.mxu0 0.0
    %1784 = vmatpush2.msra.mxu0 0.0
    %1785 = vmatprep.mubr.f32.mxu0 0.0
    %v1786 = vand.u32 %v1284, 4294901760
    %1787 = vmatmul.mubr.f32.gmra.mxu0 %v1786
    %v1788 = vpop.f32.mrf.mxu0
    %v1789 = vadd.f32 %v1488, %v1788
    %v1790 = vpop.f32.mrf.mxu0
    %1791 = vmatprep.mubr.f32.mxu0 0.0
    %v1792 = vand.u32 %v1290, 4294901760
    %1793 = vmatmul.mubr.f32.gmra.mxu0 %v1792
    %v1794 = vpop.f32.mrf.mxu0
    %v1795 = vadd.f32 %v1498, %v1794
    %v1796 = vpop.f32.mrf.mxu0
    %1797 = vmatprep.mubr.f32.mxu0 0.0
    %v1798 = vand.u32 %v1296, 4294901760
    %1799 = vmatmul.mubr.f32.gmra.mxu0 %v1798
    %v1800 = vpop.f32.mrf.mxu0
    %v1801 = vadd.f32 %v1508, %v1800
    %v1802 = vpop.f32.mrf.mxu0
    %1803 = vmatprep.mubr.f32.mxu0 0.0
    %v1804 = vand.u32 %v1302, 4294901760
    %1805 = vmatmul.mubr.f32.gmra.mxu0 %v1804
    %v1806 = vpop.f32.mrf.mxu0
    %v1807 = vadd.f32 %v1518, %v1806
    %v1808 = vpop.f32.mrf.mxu0
    %1809 = vmatprep.mubr.f32.mxu0 0.0
    %v1810 = vand.u32 %v1308, 4294901760
    %1811 = vmatmul.mubr.f32.gmra.mxu0 %v1810
    %v1812 = vpop.f32.mrf.mxu0
    %v1813 = vadd.f32 %v1528, %v1812
    %v1814 = vpop.f32.mrf.mxu0
    %1815 = vmatprep.mubr.f32.mxu0 0.0
    %v1816 = vand.u32 %v1314, 4294901760
    %1817 = vmatmul.mubr.f32.gmra.mxu0 %v1816
    %v1818 = vpop.f32.mrf.mxu0
    %v1819 = vadd.f32 %v1538, %v1818
    %v1820 = vpop.f32.mrf.mxu0
    %1821 = vmatprep.mubr.f32.mxu0 0.0
    %v1822 = vand.u32 %v1320, 4294901760
    %1823 = vmatmul.mubr.f32.gmra.mxu0 %v1822
    %v1824 = vpop.f32.mrf.mxu0
    %v1825 = vadd.f32 %v1548, %v1824
    %v1826 = vpop.f32.mrf.mxu0
    %1827 = vmatprep.mubr.f32.mxu0 0.0
    %v1828 = vand.u32 %v1326, 4294901760
    %1829 = vmatmul.mubr.f32.gmra.mxu0 %v1828
    %v1830 = vpop.f32.mrf.mxu0
    %v1831 = vadd.f32 %v1558, %v1830
    %v1832 = vpop.f32.mrf.mxu0
    %1833 = vmatprep.mubr.f32.mxu0 0.0
    %v1834 = vand.u32 %v1332, 4294901760
    %1835 = vmatmul.mubr.f32.gmra.mxu0 %v1834
    %v1836 = vpop.f32.mrf.mxu0
    %v1837 = vadd.f32 %v1568, %v1836
    %v1838 = vpop.f32.mrf.mxu0
    %1839 = vmatprep.mubr.f32.mxu0 0.0
    %v1840 = vand.u32 %v1338, 4294901760
    %1841 = vmatmul.mubr.f32.gmra.mxu0 %v1840
    %v1842 = vpop.f32.mrf.mxu0
    %v1843 = vadd.f32 %v1578, %v1842
    %v1844 = vpop.f32.mrf.mxu0
    %1845 = vmatprep.mubr.f32.mxu0 0.0
    %v1846 = vand.u32 %v1344, 4294901760
    %1847 = vmatmul.mubr.f32.gmra.mxu0 %v1846
    %v1848 = vpop.f32.mrf.mxu0
    %v1849 = vadd.f32 %v1588, %v1848
    %v1850 = vpop.f32.mrf.mxu0
    %1851 = vmatprep.mubr.f32.mxu0 0.0
    %v1852 = vand.u32 %v1350, 4294901760
    %1853 = vmatmul.mubr.f32.gmra.mxu0 %v1852
    %v1854 = vpop.f32.mrf.mxu0
    %v1855 = vadd.f32 %v1598, %v1854
    %v1856 = vpop.f32.mrf.mxu0
    %1857 = vmatprep.mubr.f32.mxu0 0.0
    %v1858 = vand.u32 %v1356, 4294901760
    %1859 = vmatmul.mubr.f32.gmra.mxu0 %v1858
    %v1860 = vpop.f32.mrf.mxu0
    %v1861 = vadd.f32 %v1608, %v1860
    %v1862 = vpop.f32.mrf.mxu0
    %1863 = vmatprep.mubr.f32.mxu0 0.0
    %v1864 = vand.u32 %v1362, 4294901760
    %1865 = vmatmul.mubr.f32.gmra.mxu0 %v1864
    %v1866 = vpop.f32.mrf.mxu0
    %v1867 = vadd.f32 %v1618, %v1866
    %v1868 = vpop.f32.mrf.mxu0
    %1869 = vmatprep.mubr.f32.mxu0 0.0
    %v1870 = vand.u32 %v1368, 4294901760
    %1871 = vmatmul.mubr.f32.gmra.mxu0 %v1870
    %v1872 = vpop.f32.mrf.mxu0
    %v1873 = vadd.f32 %v1628, %v1872
    %v1874 = vpop.f32.mrf.mxu0
    %1875 = vmatprep.mubr.f32.mxu0 0.0
    %v1876 = vand.u32 %v1374, 4294901760
    %1877 = vmatmul.mubr.f32.gmra.mxu0 %v1876
    %v1878 = vpop.f32.mrf.mxu0
    %v1879 = vadd.f32 %v1638, %v1878
    %v1880 = vpop.f32.mrf.mxu0
    %1881 = vdwg.mxu0
    %1882 = vmatprep.subr.mxu0 0.0
    %v1883 = vand.u32 %v1392, 4294901760
    %v1884 = vsub.f32 %v1392, %v1883
    %1885 = vmatpush1.msra.mxu0 %v1884
    %1886 = vmatprep.subr.mxu0 0.0
    %v1887 = vand.u32 %v1391, 4294901760
    %v1888 = vsub.f32 %v1391, %v1887
    %1889 = vmatpush1.msra.mxu0 %v1888
    %1890 = vmatprep.subr.mxu0 0.0
    %v1891 = vand.u32 %v1390, 4294901760
    %v1892 = vsub.f32 %v1390, %v1891
    %1893 = vmatpush1.msra.mxu0 %v1892
    %1894 = vmatprep.subr.mxu0 0.0
    %v1895 = vand.u32 %v1389, 4294901760
    %v1896 = vsub.f32 %v1389, %v1895
    %1897 = vmatpush1.msra.mxu0 %v1896
    %1898 = vmatprep.subr.mxu0 0.0
    %v1899 = vand.u32 %v1388, 4294901760
    %v1900 = vsub.f32 %v1388, %v1899
    %1901 = vmatpush1.msra.mxu0 %v1900
    %1902 = vmatprep.subr.mxu0 0.0
    %v1903 = vand.u32 %v1387, 4294901760
    %v1904 = vsub.f32 %v1387, %v1903
    %1905 = vmatpush1.msra.mxu0 %v1904
    %1906 = vmatprep.subr.mxu0 0.0
    %v1907 = vand.u32 %v1386, 4294901760
    %v1908 = vsub.f32 %v1386, %v1907
    %1909 = vmatpush1.msra.mxu0 %v1908
    %1910 = vmatprep.subr.mxu0 0.0
    %v1911 = vand.u32 %v1385, 4294901760
    %v1912 = vsub.f32 %v1385, %v1911
    %1913 = vmatpush1.msra.mxu0 %v1912
    %1914 = vmatprep.subr.mxu0 0.0
    %v1915 = vand.u32 %v1384, 4294901760
    %v1916 = vsub.f32 %v1384, %v1915
    %1917 = vmatpush1.msra.mxu0 %v1916
    %1918 = vmatprep.subr.mxu0 0.0
    %v1919 = vand.u32 %v1383, 4294901760
    %v1920 = vsub.f32 %v1383, %v1919
    %1921 = vmatpush1.msra.mxu0 %v1920
    %1922 = vmatprep.subr.mxu0 0.0
    %v1923 = vand.u32 %v1382, 4294901760
    %v1924 = vsub.f32 %v1382, %v1923
    %1925 = vmatpush1.msra.mxu0 %v1924
    %1926 = vmatprep.subr.mxu0 0.0
    %v1927 = vand.u32 %v1381, 4294901760
    %v1928 = vsub.f32 %v1381, %v1927
    %1929 = vmatpush1.msra.mxu0 %v1928
    %1930 = vmatprep.subr.mxu0 0.0
    %v1931 = vand.u32 %v1380, 4294901760
    %v1932 = vsub.f32 %v1380, %v1931
    %1933 = vmatpush1.msra.mxu0 %v1932
    %1934 = vmatprep.subr.mxu0 0.0
    %v1935 = vand.u32 %v1379, 4294901760
    %v1936 = vsub.f32 %v1379, %v1935
    %1937 = vmatpush1.msra.mxu0 %v1936
    %1938 = vmatprep.subr.mxu0 0.0
    %v1939 = vand.u32 %v1378, 4294901760
    %v1940 = vsub.f32 %v1378, %v1939
    %1941 = vmatpush1.msra.mxu0 %v1940
    %1942 = vmatprep.subr.mxu0 0.0
    %v1943 = vand.u32 %v1377, 4294901760
    %v1944 = vsub.f32 %v1377, %v1943
    %1945 = vmatpush1.msra.mxu0 %v1944
    %1946 = vmatprep.subr.mxu0 0.0
    %1947 = vmatpush2.msra.mxu0 0.0
    %1948 = vmatprep.subr.mxu0 0.0
    %1949 = vmatpush2.msra.mxu0 0.0
    %1950 = vmatprep.subr.mxu0 0.0
    %1951 = vmatpush2.msra.mxu0 0.0
    %1952 = vmatprep.subr.mxu0 0.0
    %1953 = vmatpush2.msra.mxu0 0.0
    %1954 = vmatprep.subr.mxu0 0.0
    %1955 = vmatpush2.msra.mxu0 0.0
    %1956 = vmatprep.subr.mxu0 0.0
    %1957 = vmatpush2.msra.mxu0 0.0
    %1958 = vmatprep.subr.mxu0 0.0
    %1959 = vmatpush2.msra.mxu0 0.0
    %1960 = vmatprep.subr.mxu0 0.0
    %1961 = vmatpush2.msra.mxu0 0.0
    %1962 = vmatprep.subr.mxu0 0.0
    %1963 = vmatpush2.msra.mxu0 0.0
    %1964 = vmatprep.subr.mxu0 0.0
    %1965 = vmatpush2.msra.mxu0 0.0
    %1966 = vmatprep.subr.mxu0 0.0
    %1967 = vmatpush2.msra.mxu0 0.0
    %1968 = vmatprep.subr.mxu0 0.0
    %1969 = vmatpush2.msra.mxu0 0.0
    %1970 = vmatprep.subr.mxu0 0.0
    %1971 = vmatpush2.msra.mxu0 0.0
    %1972 = vmatprep.subr.mxu0 0.0
    %1973 = vmatpush2.msra.mxu0 0.0
    %1974 = vmatprep.subr.mxu0 0.0
    %1975 = vmatpush2.msra.mxu0 0.0
    %1976 = vmatprep.subr.mxu0 0.0
    %1977 = vmatpush2.msra.mxu0 0.0
    %1978 = vmatprep.mubr.f32.mxu0 0.0
    %v1979 = vand.u32 %v1284, 4294901760
    %v1980 = vsub.f32 %v1284, %v1979
    %1981 = vmatmul.mubr.f32.gmra.mxu0 %v1980
    %v1982 = vpop.f32.mrf.mxu0
    %v1983 = vadd.f32 %v1789, %v1982
    %v1984 = vpop.f32.mrf.mxu0
    %1985 = vmatprep.mubr.f32.mxu0 0.0
    %v1986 = vand.u32 %v1290, 4294901760
    %v1987 = vsub.f32 %v1290, %v1986
    %1988 = vmatmul.mubr.f32.gmra.mxu0 %v1987
    %v1989 = vpop.f32.mrf.mxu0
    %v1990 = vadd.f32 %v1795, %v1989
    %v1991 = vpop.f32.mrf.mxu0
    %1992 = vmatprep.mubr.f32.mxu0 0.0
    %v1993 = vand.u32 %v1296, 4294901760
    %v1994 = vsub.f32 %v1296, %v1993
    %1995 = vmatmul.mubr.f32.gmra.mxu0 %v1994
    %v1996 = vpop.f32.mrf.mxu0
    %v1997 = vadd.f32 %v1801, %v1996
    %v1998 = vpop.f32.mrf.mxu0
    %1999 = vmatprep.mubr.f32.mxu0 0.0
    %v2000 = vand.u32 %v1302, 4294901760
    %v2001 = vsub.f32 %v1302, %v2000
    %2002 = vmatmul.mubr.f32.gmra.mxu0 %v2001
    %v2003 = vpop.f32.mrf.mxu0
    %v2004 = vadd.f32 %v1807, %v2003
    %v2005 = vpop.f32.mrf.mxu0
    %2006 = vmatprep.mubr.f32.mxu0 0.0
    %v2007 = vand.u32 %v1308, 4294901760
    %v2008 = vsub.f32 %v1308, %v2007
    %2009 = vmatmul.mubr.f32.gmra.mxu0 %v2008
    %v2010 = vpop.f32.mrf.mxu0
    %v2011 = vadd.f32 %v1813, %v2010
    %v2012 = vpop.f32.mrf.mxu0
    %2013 = vmatprep.mubr.f32.mxu0 0.0
    %v2014 = vand.u32 %v1314, 4294901760
    %v2015 = vsub.f32 %v1314, %v2014
    %2016 = vmatmul.mubr.f32.gmra.mxu0 %v2015
    %v2017 = vpop.f32.mrf.mxu0
    %v2018 = vadd.f32 %v1819, %v2017
    %v2019 = vpop.f32.mrf.mxu0
    %2020 = vmatprep.mubr.f32.mxu0 0.0
    %v2021 = vand.u32 %v1320, 4294901760
    %v2022 = vsub.f32 %v1320, %v2021
    %2023 = vmatmul.mubr.f32.gmra.mxu0 %v2022
    %v2024 = vpop.f32.mrf.mxu0
    %v2025 = vadd.f32 %v1825, %v2024
    %v2026 = vpop.f32.mrf.mxu0
    %2027 = vmatprep.mubr.f32.mxu0 0.0
    %v2028 = vand.u32 %v1326, 4294901760
    %v2029 = vsub.f32 %v1326, %v2028
    %2030 = vmatmul.mubr.f32.gmra.mxu0 %v2029
    %v2031 = vpop.f32.mrf.mxu0
    %v2032 = vadd.f32 %v1831, %v2031
    %v2033 = vpop.f32.mrf.mxu0
    %2034 = vmatprep.mubr.f32.mxu0 0.0
    %v2035 = vand.u32 %v1332, 4294901760
    %v2036 = vsub.f32 %v1332, %v2035
    %2037 = vmatmul.mubr.f32.gmra.mxu0 %v2036
    %v2038 = vpop.f32.mrf.mxu0
    %v2039 = vadd.f32 %v1837, %v2038
    %v2040 = vpop.f32.mrf.mxu0
    %2041 = vmatprep.mubr.f32.mxu0 0.0
    %v2042 = vand.u32 %v1338, 4294901760
    %v2043 = vsub.f32 %v1338, %v2042
    %2044 = vmatmul.mubr.f32.gmra.mxu0 %v2043
    %v2045 = vpop.f32.mrf.mxu0
    %v2046 = vadd.f32 %v1843, %v2045
    %v2047 = vpop.f32.mrf.mxu0
    %2048 = vmatprep.mubr.f32.mxu0 0.0
    %v2049 = vand.u32 %v1344, 4294901760
    %v2050 = vsub.f32 %v1344, %v2049
    %2051 = vmatmul.mubr.f32.gmra.mxu0 %v2050
    %v2052 = vpop.f32.mrf.mxu0
    %v2053 = vadd.f32 %v1849, %v2052
    %v2054 = vpop.f32.mrf.mxu0
    %2055 = vmatprep.mubr.f32.mxu0 0.0
    %v2056 = vand.u32 %v1350, 4294901760
    %v2057 = vsub.f32 %v1350, %v2056
    %2058 = vmatmul.mubr.f32.gmra.mxu0 %v2057
    %v2059 = vpop.f32.mrf.mxu0
    %v2060 = vadd.f32 %v1855, %v2059
    %v2061 = vpop.f32.mrf.mxu0
    %2062 = vmatprep.mubr.f32.mxu0 0.0
    %v2063 = vand.u32 %v1356, 4294901760
    %v2064 = vsub.f32 %v1356, %v2063
    %2065 = vmatmul.mubr.f32.gmra.mxu0 %v2064
    %v2066 = vpop.f32.mrf.mxu0
    %v2067 = vadd.f32 %v1861, %v2066
    %v2068 = vpop.f32.mrf.mxu0
    %2069 = vmatprep.mubr.f32.mxu0 0.0
    %v2070 = vand.u32 %v1362, 4294901760
    %v2071 = vsub.f32 %v1362, %v2070
    %2072 = vmatmul.mubr.f32.gmra.mxu0 %v2071
    %v2073 = vpop.f32.mrf.mxu0
    %v2074 = vadd.f32 %v1867, %v2073
    %v2075 = vpop.f32.mrf.mxu0
    %2076 = vmatprep.mubr.f32.mxu0 0.0
    %v2077 = vand.u32 %v1368, 4294901760
    %v2078 = vsub.f32 %v1368, %v2077
    %2079 = vmatmul.mubr.f32.gmra.mxu0 %v2078
    %v2080 = vpop.f32.mrf.mxu0
    %v2081 = vadd.f32 %v1873, %v2080
    %v2082 = vpop.f32.mrf.mxu0
    %2083 = vmatprep.mubr.f32.mxu0 0.0
    %v2084 = vand.u32 %v1374, 4294901760
    %v2085 = vsub.f32 %v1374, %v2084
    %2086 = vmatmul.mubr.f32.gmra.mxu0 %v2085
    %v2087 = vpop.f32.mrf.mxu0
    %v2088 = vadd.f32 %v1879, %v2087
    %v2089 = vpop.f32.mrf.mxu0
    %2090 = vdwg.mxu0
    %2091 = vmatprep.subr.mxu0 0.0
    %v2092 = vand.u32 %v1392, 4294901760
    %2093 = vmatpush1.msra.mxu0 %v2092
    %2094 = vmatprep.subr.mxu0 0.0
    %v2095 = vand.u32 %v1391, 4294901760
    %2096 = vmatpush1.msra.mxu0 %v2095
    %2097 = vmatprep.subr.mxu0 0.0
    %v2098 = vand.u32 %v1390, 4294901760
    %2099 = vmatpush1.msra.mxu0 %v2098
    %2100 = vmatprep.subr.mxu0 0.0
    %v2101 = vand.u32 %v1389, 4294901760
    %2102 = vmatpush1.msra.mxu0 %v2101
    %2103 = vmatprep.subr.mxu0 0.0
    %v2104 = vand.u32 %v1388, 4294901760
    %2105 = vmatpush1.msra.mxu0 %v2104
    %2106 = vmatprep.subr.mxu0 0.0
    %v2107 = vand.u32 %v1387, 4294901760
    %2108 = vmatpush1.msra.mxu0 %v2107
    %2109 = vmatprep.subr.mxu0 0.0
    %v2110 = vand.u32 %v1386, 4294901760
    %2111 = vmatpush1.msra.mxu0 %v2110
    %2112 = vmatprep.subr.mxu0 0.0
    %v2113 = vand.u32 %v1385, 4294901760
    %2114 = vmatpush1.msra.mxu0 %v2113
    %2115 = vmatprep.subr.mxu0 0.0
    %v2116 = vand.u32 %v1384, 4294901760
    %2117 = vmatpush1.msra.mxu0 %v2116
    %2118 = vmatprep.subr.mxu0 0.0
    %v2119 = vand.u32 %v1383, 4294901760
    %2120 = vmatpush1.msra.mxu0 %v2119
    %2121 = vmatprep.subr.mxu0 0.0
    %v2122 = vand.u32 %v1382, 4294901760
    %2123 = vmatpush1.msra.mxu0 %v2122
    %2124 = vmatprep.subr.mxu0 0.0
    %v2125 = vand.u32 %v1381, 4294901760
    %2126 = vmatpush1.msra.mxu0 %v2125
    %2127 = vmatprep.subr.mxu0 0.0
    %v2128 = vand.u32 %v1380, 4294901760
    %2129 = vmatpush1.msra.mxu0 %v2128
    %2130 = vmatprep.subr.mxu0 0.0
    %v2131 = vand.u32 %v1379, 4294901760
    %2132 = vmatpush1.msra.mxu0 %v2131
    %2133 = vmatprep.subr.mxu0 0.0
    %v2134 = vand.u32 %v1378, 4294901760
    %2135 = vmatpush1.msra.mxu0 %v2134
    %2136 = vmatprep.subr.mxu0 0.0
    %v2137 = vand.u32 %v1377, 4294901760
    %2138 = vmatpush1.msra.mxu0 %v2137
    %2139 = vmatprep.subr.mxu0 0.0
    %2140 = vmatpush2.msra.mxu0 0.0
    %2141 = vmatprep.subr.mxu0 0.0
    %2142 = vmatpush2.msra.mxu0 0.0
    %2143 = vmatprep.subr.mxu0 0.0
    %2144 = vmatpush2.msra.mxu0 0.0
    %2145 = vmatprep.subr.mxu0 0.0
    %2146 = vmatpush2.msra.mxu0 0.0
    %2147 = vmatprep.subr.mxu0 0.0
    %2148 = vmatpush2.msra.mxu0 0.0
    %2149 = vmatprep.subr.mxu0 0.0
    %2150 = vmatpush2.msra.mxu0 0.0
    %2151 = vmatprep.subr.mxu0 0.0
    %2152 = vmatpush2.msra.mxu0 0.0
    %2153 = vmatprep.subr.mxu0 0.0
    %2154 = vmatpush2.msra.mxu0 0.0
    %2155 = vmatprep.subr.mxu0 0.0
    %2156 = vmatpush2.msra.mxu0 0.0
    %2157 = vmatprep.subr.mxu0 0.0
    %2158 = vmatpush2.msra.mxu0 0.0
    %2159 = vmatprep.subr.mxu0 0.0
    %2160 = vmatpush2.msra.mxu0 0.0
    %2161 = vmatprep.subr.mxu0 0.0
    %2162 = vmatpush2.msra.mxu0 0.0
    %2163 = vmatprep.subr.mxu0 0.0
    %2164 = vmatpush2.msra.mxu0 0.0
    %2165 = vmatprep.subr.mxu0 0.0
    %2166 = vmatpush2.msra.mxu0 0.0
    %2167 = vmatprep.subr.mxu0 0.0
    %2168 = vmatpush2.msra.mxu0 0.0
    %2169 = vmatprep.subr.mxu0 0.0
    %2170 = vmatpush2.msra.mxu0 0.0
    %2171 = vmatprep.mubr.f32.mxu0 0.0
    %v2172 = vand.u32 %v1284, 4294901760
    %v2173 = vsub.f32 %v1284, %v2172
    %v2174 = vand.u32 %v2173, 4294901760
    %2175 = vmatmul.mubr.f32.gmra.mxu0 %v2174
    %v2176 = vpop.f32.mrf.mxu0
    %v2177 = vadd.f32 %v1983, %v2176
    %v2178 = vpop.f32.mrf.mxu0
    %2179 = vmatprep.mubr.f32.mxu0 0.0
    %v2180 = vand.u32 %v1290, 4294901760
    %v2181 = vsub.f32 %v1290, %v2180
    %v2182 = vand.u32 %v2181, 4294901760
    %2183 = vmatmul.mubr.f32.gmra.mxu0 %v2182
    %v2184 = vpop.f32.mrf.mxu0
    %v2185 = vadd.f32 %v1990, %v2184
    %v2186 = vpop.f32.mrf.mxu0
    %2187 = vmatprep.mubr.f32.mxu0 0.0
    %v2188 = vand.u32 %v1296, 4294901760
    %v2189 = vsub.f32 %v1296, %v2188
    %v2190 = vand.u32 %v2189, 4294901760
    %2191 = vmatmul.mubr.f32.gmra.mxu0 %v2190
    %v2192 = vpop.f32.mrf.mxu0
    %v2193 = vadd.f32 %v1997, %v2192
    %v2194 = vpop.f32.mrf.mxu0
    %2195 = vmatprep.mubr.f32.mxu0 0.0
    %v2196 = vand.u32 %v1302, 4294901760
    %v2197 = vsub.f32 %v1302, %v2196
    %v2198 = vand.u32 %v2197, 4294901760
    %2199 = vmatmul.mubr.f32.gmra.mxu0 %v2198
    %v2200 = vpop.f32.mrf.mxu0
    %v2201 = vadd.f32 %v2004, %v2200
    %v2202 = vpop.f32.mrf.mxu0
    %2203 = vmatprep.mubr.f32.mxu0 0.0
    %v2204 = vand.u32 %v1308, 4294901760
    %v2205 = vsub.f32 %v1308, %v2204
    %v2206 = vand.u32 %v2205, 4294901760
    %2207 = vmatmul.mubr.f32.gmra.mxu0 %v2206
    %v2208 = vpop.f32.mrf.mxu0
    %v2209 = vadd.f32 %v2011, %v2208
    %v2210 = vpop.f32.mrf.mxu0
    %2211 = vmatprep.mubr.f32.mxu0 0.0
    %v2212 = vand.u32 %v1314, 4294901760
    %v2213 = vsub.f32 %v1314, %v2212
    %v2214 = vand.u32 %v2213, 4294901760
    %2215 = vmatmul.mubr.f32.gmra.mxu0 %v2214
    %v2216 = vpop.f32.mrf.mxu0
    %v2217 = vadd.f32 %v2018, %v2216
    %v2218 = vpop.f32.mrf.mxu0
    %2219 = vmatprep.mubr.f32.mxu0 0.0
    %v2220 = vand.u32 %v1320, 4294901760
    %v2221 = vsub.f32 %v1320, %v2220
    %v2222 = vand.u32 %v2221, 4294901760
    %2223 = vmatmul.mubr.f32.gmra.mxu0 %v2222
    %v2224 = vpop.f32.mrf.mxu0
    %v2225 = vadd.f32 %v2025, %v2224
    %v2226 = vpop.f32.mrf.mxu0
    %2227 = vmatprep.mubr.f32.mxu0 0.0
    %v2228 = vand.u32 %v1326, 4294901760
    %v2229 = vsub.f32 %v1326, %v2228
    %v2230 = vand.u32 %v2229, 4294901760
    %2231 = vmatmul.mubr.f32.gmra.mxu0 %v2230
    %v2232 = vpop.f32.mrf.mxu0
    %v2233 = vadd.f32 %v2032, %v2232
    %v2234 = vpop.f32.mrf.mxu0
    %2235 = vmatprep.mubr.f32.mxu0 0.0
    %v2236 = vand.u32 %v1332, 4294901760
    %v2237 = vsub.f32 %v1332, %v2236
    %v2238 = vand.u32 %v2237, 4294901760
    %2239 = vmatmul.mubr.f32.gmra.mxu0 %v2238
    %v2240 = vpop.f32.mrf.mxu0
    %v2241 = vadd.f32 %v2039, %v2240
    %v2242 = vpop.f32.mrf.mxu0
    %2243 = vmatprep.mubr.f32.mxu0 0.0
    %v2244 = vand.u32 %v1338, 4294901760
    %v2245 = vsub.f32 %v1338, %v2244
    %v2246 = vand.u32 %v2245, 4294901760
    %2247 = vmatmul.mubr.f32.gmra.mxu0 %v2246
    %v2248 = vpop.f32.mrf.mxu0
    %v2249 = vadd.f32 %v2046, %v2248
    %v2250 = vpop.f32.mrf.mxu0
    %2251 = vmatprep.mubr.f32.mxu0 0.0
    %v2252 = vand.u32 %v1344, 4294901760
    %v2253 = vsub.f32 %v1344, %v2252
    %v2254 = vand.u32 %v2253, 4294901760
    %2255 = vmatmul.mubr.f32.gmra.mxu0 %v2254
    %v2256 = vpop.f32.mrf.mxu0
    %v2257 = vadd.f32 %v2053, %v2256
    %v2258 = vpop.f32.mrf.mxu0
    %2259 = vmatprep.mubr.f32.mxu0 0.0
    %v2260 = vand.u32 %v1350, 4294901760
    %v2261 = vsub.f32 %v1350, %v2260
    %v2262 = vand.u32 %v2261, 4294901760
    %2263 = vmatmul.mubr.f32.gmra.mxu0 %v2262
    %v2264 = vpop.f32.mrf.mxu0
    %v2265 = vadd.f32 %v2060, %v2264
    %v2266 = vpop.f32.mrf.mxu0
    %2267 = vmatprep.mubr.f32.mxu0 0.0
    %v2268 = vand.u32 %v1356, 4294901760
    %v2269 = vsub.f32 %v1356, %v2268
    %v2270 = vand.u32 %v2269, 4294901760
    %2271 = vmatmul.mubr.f32.gmra.mxu0 %v2270
    %v2272 = vpop.f32.mrf.mxu0
    %v2273 = vadd.f32 %v2067, %v2272
    %v2274 = vpop.f32.mrf.mxu0
    %2275 = vmatprep.mubr.f32.mxu0 0.0
    %v2276 = vand.u32 %v1362, 4294901760
    %v2277 = vsub.f32 %v1362, %v2276
    %v2278 = vand.u32 %v2277, 4294901760
    %2279 = vmatmul.mubr.f32.gmra.mxu0 %v2278
    %v2280 = vpop.f32.mrf.mxu0
    %v2281 = vadd.f32 %v2074, %v2280
    %v2282 = vpop.f32.mrf.mxu0
    %2283 = vmatprep.mubr.f32.mxu0 0.0
    %v2284 = vand.u32 %v1368, 4294901760
    %v2285 = vsub.f32 %v1368, %v2284
    %v2286 = vand.u32 %v2285, 4294901760
    %2287 = vmatmul.mubr.f32.gmra.mxu0 %v2286
    %v2288 = vpop.f32.mrf.mxu0
    %v2289 = vadd.f32 %v2081, %v2288
    %v2290 = vpop.f32.mrf.mxu0
    %2291 = vmatprep.mubr.f32.mxu0 0.0
    %v2292 = vand.u32 %v1374, 4294901760
    %v2293 = vsub.f32 %v1374, %v2292
    %v2294 = vand.u32 %v2293, 4294901760
    %2295 = vmatmul.mubr.f32.gmra.mxu0 %v2294
    %v2296 = vpop.f32.mrf.mxu0
    %v2297 = vadd.f32 %v2088, %v2296
    %v2298 = vpop.f32.mrf.mxu0
    %2299 = vdwg.mxu0
    %2300 = vmatprep.subr.mxu0 0.0
    %v2301 = vand.u32 %v1392, 4294901760
    %v2302 = vsub.f32 %v1392, %v2301
    %v2303 = vand.u32 %v2302, 4294901760
    %2304 = vmatpush1.msra.mxu0 %v2303
    %2305 = vmatprep.subr.mxu0 0.0
    %v2306 = vand.u32 %v1391, 4294901760
    %v2307 = vsub.f32 %v1391, %v2306
    %v2308 = vand.u32 %v2307, 4294901760
    %2309 = vmatpush1.msra.mxu0 %v2308
    %2310 = vmatprep.subr.mxu0 0.0
    %v2311 = vand.u32 %v1390, 4294901760
    %v2312 = vsub.f32 %v1390, %v2311
    %v2313 = vand.u32 %v2312, 4294901760
    %2314 = vmatpush1.msra.mxu0 %v2313
    %2315 = vmatprep.subr.mxu0 0.0
    %v2316 = vand.u32 %v1389, 4294901760
    %v2317 = vsub.f32 %v1389, %v2316
    %v2318 = vand.u32 %v2317, 4294901760
    %2319 = vmatpush1.msra.mxu0 %v2318
    %2320 = vmatprep.subr.mxu0 0.0
    %v2321 = vand.u32 %v1388, 4294901760
    %v2322 = vsub.f32 %v1388, %v2321
    %v2323 = vand.u32 %v2322, 4294901760
    %2324 = vmatpush1.msra.mxu0 %v2323
    %2325 = vmatprep.subr.mxu0 0.0
    %v2326 = vand.u32 %v1387, 4294901760
    %v2327 = vsub.f32 %v1387, %v2326
    %v2328 = vand.u32 %v2327, 4294901760
    %2329 = vmatpush1.msra.mxu0 %v2328
    %2330 = vmatprep.subr.mxu0 0.0
    %v2331 = vand.u32 %v1386, 4294901760
    %v2332 = vsub.f32 %v1386, %v2331
    %v2333 = vand.u32 %v2332, 4294901760
    %2334 = vmatpush1.msra.mxu0 %v2333
    %2335 = vmatprep.subr.mxu0 0.0
    %v2336 = vand.u32 %v1385, 4294901760
    %v2337 = vsub.f32 %v1385, %v2336
    %v2338 = vand.u32 %v2337, 4294901760
    %2339 = vmatpush1.msra.mxu0 %v2338
    %2340 = vmatprep.subr.mxu0 0.0
    %v2341 = vand.u32 %v1384, 4294901760
    %v2342 = vsub.f32 %v1384, %v2341
    %v2343 = vand.u32 %v2342, 4294901760
    %2344 = vmatpush1.msra.mxu0 %v2343
    %2345 = vmatprep.subr.mxu0 0.0
    %v2346 = vand.u32 %v1383, 4294901760
    %v2347 = vsub.f32 %v1383, %v2346
    %v2348 = vand.u32 %v2347, 4294901760
    %2349 = vmatpush1.msra.mxu0 %v2348
    %2350 = vmatprep.subr.mxu0 0.0
    %v2351 = vand.u32 %v1382, 4294901760
    %v2352 = vsub.f32 %v1382, %v2351
    %v2353 = vand.u32 %v2352, 4294901760
    %2354 = vmatpush1.msra.mxu0 %v2353
    %2355 = vmatprep.subr.mxu0 0.0
    %v2356 = vand.u32 %v1381, 4294901760
    %v2357 = vsub.f32 %v1381, %v2356
    %v2358 = vand.u32 %v2357, 4294901760
    %2359 = vmatpush1.msra.mxu0 %v2358
    %2360 = vmatprep.subr.mxu0 0.0
    %v2361 = vand.u32 %v1380, 4294901760
    %v2362 = vsub.f32 %v1380, %v2361
    %v2363 = vand.u32 %v2362, 4294901760
    %2364 = vmatpush1.msra.mxu0 %v2363
    %2365 = vmatprep.subr.mxu0 0.0
    %v2366 = vand.u32 %v1379, 4294901760
    %v2367 = vsub.f32 %v1379, %v2366
    %v2368 = vand.u32 %v2367, 4294901760
    %2369 = vmatpush1.msra.mxu0 %v2368
    %2370 = vmatprep.subr.mxu0 0.0
    %v2371 = vand.u32 %v1378, 4294901760
    %v2372 = vsub.f32 %v1378, %v2371
    %v2373 = vand.u32 %v2372, 4294901760
    %2374 = vmatpush1.msra.mxu0 %v2373
    %2375 = vmatprep.subr.mxu0 0.0
    %v2376 = vand.u32 %v1377, 4294901760
    %v2377 = vsub.f32 %v1377, %v2376
    %v2378 = vand.u32 %v2377, 4294901760
    %2379 = vmatpush1.msra.mxu0 %v2378
    %2380 = vmatprep.subr.mxu0 0.0
    %2381 = vmatpush2.msra.mxu0 0.0
    %2382 = vmatprep.subr.mxu0 0.0
    %2383 = vmatpush2.msra.mxu0 0.0
    %2384 = vmatprep.subr.mxu0 0.0
    %2385 = vmatpush2.msra.mxu0 0.0
    %2386 = vmatprep.subr.mxu0 0.0
    %2387 = vmatpush2.msra.mxu0 0.0
    %2388 = vmatprep.subr.mxu0 0.0
    %2389 = vmatpush2.msra.mxu0 0.0
    %2390 = vmatprep.subr.mxu0 0.0
    %2391 = vmatpush2.msra.mxu0 0.0
    %2392 = vmatprep.subr.mxu0 0.0
    %2393 = vmatpush2.msra.mxu0 0.0
    %2394 = vmatprep.subr.mxu0 0.0
    %2395 = vmatpush2.msra.mxu0 0.0
    %2396 = vmatprep.subr.mxu0 0.0
    %2397 = vmatpush2.msra.mxu0 0.0
    %2398 = vmatprep.subr.mxu0 0.0
    %2399 = vmatpush2.msra.mxu0 0.0
    %2400 = vmatprep.subr.mxu0 0.0
    %2401 = vmatpush2.msra.mxu0 0.0
    %2402 = vmatprep.subr.mxu0 0.0
    %2403 = vmatpush2.msra.mxu0 0.0
    %2404 = vmatprep.subr.mxu0 0.0
    %2405 = vmatpush2.msra.mxu0 0.0
    %2406 = vmatprep.subr.mxu0 0.0
    %2407 = vmatpush2.msra.mxu0 0.0
    %2408 = vmatprep.subr.mxu0 0.0
    %2409 = vmatpush2.msra.mxu0 0.0
    %2410 = vmatprep.subr.mxu0 0.0
    %2411 = vmatpush2.msra.mxu0 0.0
    %2412 = vmatprep.mubr.f32.mxu0 0.0
    %v2413 = vand.u32 %v1284, 4294901760
    %2414 = vmatmul.mubr.f32.gmra.mxu0 %v2413
    %v2415 = vpop.f32.mrf.mxu0
    %v2416 = vadd.f32 %v2177, %v2415
    %v2417 = vpop.f32.mrf.mxu0
    %2418 = vmatprep.mubr.f32.mxu0 0.0
    %v2419 = vand.u32 %v1290, 4294901760
    %2420 = vmatmul.mubr.f32.gmra.mxu0 %v2419
    %v2421 = vpop.f32.mrf.mxu0
    %v2422 = vadd.f32 %v2185, %v2421
    %v2423 = vpop.f32.mrf.mxu0
    %2424 = vmatprep.mubr.f32.mxu0 0.0
    %v2425 = vand.u32 %v1296, 4294901760
    %2426 = vmatmul.mubr.f32.gmra.mxu0 %v2425
    %v2427 = vpop.f32.mrf.mxu0
    %v2428 = vadd.f32 %v2193, %v2427
    %v2429 = vpop.f32.mrf.mxu0
    %2430 = vmatprep.mubr.f32.mxu0 0.0
    %v2431 = vand.u32 %v1302, 4294901760
    %2432 = vmatmul.mubr.f32.gmra.mxu0 %v2431
    %v2433 = vpop.f32.mrf.mxu0
    %v2434 = vadd.f32 %v2201, %v2433
    %v2435 = vpop.f32.mrf.mxu0
    %2436 = vmatprep.mubr.f32.mxu0 0.0
    %v2437 = vand.u32 %v1308, 4294901760
    %2438 = vmatmul.mubr.f32.gmra.mxu0 %v2437
    %v2439 = vpop.f32.mrf.mxu0
    %v2440 = vadd.f32 %v2209, %v2439
    %v2441 = vpop.f32.mrf.mxu0
    %2442 = vmatprep.mubr.f32.mxu0 0.0
    %v2443 = vand.u32 %v1314, 4294901760
    %2444 = vmatmul.mubr.f32.gmra.mxu0 %v2443
    %v2445 = vpop.f32.mrf.mxu0
    %v2446 = vadd.f32 %v2217, %v2445
    %v2447 = vpop.f32.mrf.mxu0
    %2448 = vmatprep.mubr.f32.mxu0 0.0
    %v2449 = vand.u32 %v1320, 4294901760
    %2450 = vmatmul.mubr.f32.gmra.mxu0 %v2449
    %v2451 = vpop.f32.mrf.mxu0
    %v2452 = vadd.f32 %v2225, %v2451
    %v2453 = vpop.f32.mrf.mxu0
    %2454 = vmatprep.mubr.f32.mxu0 0.0
    %v2455 = vand.u32 %v1326, 4294901760
    %2456 = vmatmul.mubr.f32.gmra.mxu0 %v2455
    %v2457 = vpop.f32.mrf.mxu0
    %v2458 = vadd.f32 %v2233, %v2457
    %v2459 = vpop.f32.mrf.mxu0
    %2460 = vmatprep.mubr.f32.mxu0 0.0
    %v2461 = vand.u32 %v1332, 4294901760
    %2462 = vmatmul.mubr.f32.gmra.mxu0 %v2461
    %v2463 = vpop.f32.mrf.mxu0
    %v2464 = vadd.f32 %v2241, %v2463
    %v2465 = vpop.f32.mrf.mxu0
    %2466 = vmatprep.mubr.f32.mxu0 0.0
    %v2467 = vand.u32 %v1338, 4294901760
    %2468 = vmatmul.mubr.f32.gmra.mxu0 %v2467
    %v2469 = vpop.f32.mrf.mxu0
    %v2470 = vadd.f32 %v2249, %v2469
    %v2471 = vpop.f32.mrf.mxu0
    %2472 = vmatprep.mubr.f32.mxu0 0.0
    %v2473 = vand.u32 %v1344, 4294901760
    %2474 = vmatmul.mubr.f32.gmra.mxu0 %v2473
    %v2475 = vpop.f32.mrf.mxu0
    %v2476 = vadd.f32 %v2257, %v2475
    %v2477 = vpop.f32.mrf.mxu0
    %2478 = vmatprep.mubr.f32.mxu0 0.0
    %v2479 = vand.u32 %v1350, 4294901760
    %2480 = vmatmul.mubr.f32.gmra.mxu0 %v2479
    %v2481 = vpop.f32.mrf.mxu0
    %v2482 = vadd.f32 %v2265, %v2481
    %v2483 = vpop.f32.mrf.mxu0
    %2484 = vmatprep.mubr.f32.mxu0 0.0
    %v2485 = vand.u32 %v1356, 4294901760
    %2486 = vmatmul.mubr.f32.gmra.mxu0 %v2485
    %v2487 = vpop.f32.mrf.mxu0
    %v2488 = vadd.f32 %v2273, %v2487
    %v2489 = vpop.f32.mrf.mxu0
    %2490 = vmatprep.mubr.f32.mxu0 0.0
    %v2491 = vand.u32 %v1362, 4294901760
    %2492 = vmatmul.mubr.f32.gmra.mxu0 %v2491
    %v2493 = vpop.f32.mrf.mxu0
    %v2494 = vadd.f32 %v2281, %v2493
    %v2495 = vpop.f32.mrf.mxu0
    %2496 = vmatprep.mubr.f32.mxu0 0.0
    %v2497 = vand.u32 %v1368, 4294901760
    %2498 = vmatmul.mubr.f32.gmra.mxu0 %v2497
    %v2499 = vpop.f32.mrf.mxu0
    %v2500 = vadd.f32 %v2289, %v2499
    %v2501 = vpop.f32.mrf.mxu0
    %2502 = vmatprep.mubr.f32.mxu0 0.0
    %v2503 = vand.u32 %v1374, 4294901760
    %2504 = vmatmul.mubr.f32.gmra.mxu0 %v2503
    %v2505 = vpop.f32.mrf.mxu0
    %v2506 = vadd.f32 %v2297, %v2505
    %v2507 = vpop.f32.mrf.mxu0
    %2508 = vdwg.mxu0
    %2509 = vmatprep.subr.mxu0 0.0
    %v2510 = vand.u32 %v1392, 4294901760
    %2511 = vmatpush1.msra.mxu0 %v2510
    %2512 = vmatprep.subr.mxu0 0.0
    %v2513 = vand.u32 %v1391, 4294901760
    %2514 = vmatpush1.msra.mxu0 %v2513
    %2515 = vmatprep.subr.mxu0 0.0
    %v2516 = vand.u32 %v1390, 4294901760
    %2517 = vmatpush1.msra.mxu0 %v2516
    %2518 = vmatprep.subr.mxu0 0.0
    %v2519 = vand.u32 %v1389, 4294901760
    %2520 = vmatpush1.msra.mxu0 %v2519
    %2521 = vmatprep.subr.mxu0 0.0
    %v2522 = vand.u32 %v1388, 4294901760
    %2523 = vmatpush1.msra.mxu0 %v2522
    %2524 = vmatprep.subr.mxu0 0.0
    %v2525 = vand.u32 %v1387, 4294901760
    %2526 = vmatpush1.msra.mxu0 %v2525
    %2527 = vmatprep.subr.mxu0 0.0
    %v2528 = vand.u32 %v1386, 4294901760
    %2529 = vmatpush1.msra.mxu0 %v2528
    %2530 = vmatprep.subr.mxu0 0.0
    %v2531 = vand.u32 %v1385, 4294901760
    %2532 = vmatpush1.msra.mxu0 %v2531
    %2533 = vmatprep.subr.mxu0 0.0
    %v2534 = vand.u32 %v1384, 4294901760
    %2535 = vmatpush1.msra.mxu0 %v2534
    %2536 = vmatprep.subr.mxu0 0.0
    %v2537 = vand.u32 %v1383, 4294901760
    %2538 = vmatpush1.msra.mxu0 %v2537
    %2539 = vmatprep.subr.mxu0 0.0
    %v2540 = vand.u32 %v1382, 4294901760
    %2541 = vmatpush1.msra.mxu0 %v2540
    %2542 = vmatprep.subr.mxu0 0.0
    %v2543 = vand.u32 %v1381, 4294901760
    %2544 = vmatpush1.msra.mxu0 %v2543
    %2545 = vmatprep.subr.mxu0 0.0
    %v2546 = vand.u32 %v1380, 4294901760
    %2547 = vmatpush1.msra.mxu0 %v2546
    %2548 = vmatprep.subr.mxu0 0.0
    %v2549 = vand.u32 %v1379, 4294901760
    %2550 = vmatpush1.msra.mxu0 %v2549
    %2551 = vmatprep.subr.mxu0 0.0
    %v2552 = vand.u32 %v1378, 4294901760
    %2553 = vmatpush1.msra.mxu0 %v2552
    %2554 = vmatprep.subr.mxu0 0.0
    %v2555 = vand.u32 %v1377, 4294901760
    %2556 = vmatpush1.msra.mxu0 %v2555
    %2557 = vmatprep.subr.mxu0 0.0
    %2558 = vmatpush2.msra.mxu0 0.0
    %2559 = vmatprep.subr.mxu0 0.0
    %2560 = vmatpush2.msra.mxu0 0.0
    %2561 = vmatprep.subr.mxu0 0.0
    %2562 = vmatpush2.msra.mxu0 0.0
    %2563 = vmatprep.subr.mxu0 0.0
    %2564 = vmatpush2.msra.mxu0 0.0
    %2565 = vmatprep.subr.mxu0 0.0
    %2566 = vmatpush2.msra.mxu0 0.0
    %2567 = vmatprep.subr.mxu0 0.0
    %2568 = vmatpush2.msra.mxu0 0.0
    %2569 = vmatprep.subr.mxu0 0.0
    %2570 = vmatpush2.msra.mxu0 0.0
    %2571 = vmatprep.subr.mxu0 0.0
    %2572 = vmatpush2.msra.mxu0 0.0
    %2573 = vmatprep.subr.mxu0 0.0
    %2574 = vmatpush2.msra.mxu0 0.0
    %2575 = vmatprep.subr.mxu0 0.0
    %2576 = vmatpush2.msra.mxu0 0.0
    %2577 = vmatprep.subr.mxu0 0.0
    %2578 = vmatpush2.msra.mxu0 0.0
    %2579 = vmatprep.subr.mxu0 0.0
    %2580 = vmatpush2.msra.mxu0 0.0
    %2581 = vmatprep.subr.mxu0 0.0
    %2582 = vmatpush2.msra.mxu0 0.0
    %2583 = vmatprep.subr.mxu0 0.0
    %2584 = vmatpush2.msra.mxu0 0.0
    %2585 = vmatprep.subr.mxu0 0.0
    %2586 = vmatpush2.msra.mxu0 0.0
    %2587 = vmatprep.subr.mxu0 0.0
    %2588 = vmatpush2.msra.mxu0 0.0
    %2589 = vmatprep.mubr.f32.mxu0 0.0
    %v2590 = vand.u32 %v1284, 4294901760
    %2591 = vmatmul.mubr.f32.gmra.mxu0 %v2590
    %v2592 = vpop.f32.mrf.mxu0
    %v2593 = vadd.f32 %v2416, %v2592
    %v2594 = vpop.f32.mrf.mxu0
    %2595 = vmatprep.mubr.f32.mxu0 0.0
    %v2596 = vand.u32 %v1290, 4294901760
    %2597 = vmatmul.mubr.f32.gmra.mxu0 %v2596
    %v2598 = vpop.f32.mrf.mxu0
    %v2599 = vadd.f32 %v2422, %v2598
    %v2600 = vpop.f32.mrf.mxu0
    %2601 = vmatprep.mubr.f32.mxu0 0.0
    %v2602 = vand.u32 %v1296, 4294901760
    %2603 = vmatmul.mubr.f32.gmra.mxu0 %v2602
    %v2604 = vpop.f32.mrf.mxu0
    %v2605 = vadd.f32 %v2428, %v2604
    %v2606 = vpop.f32.mrf.mxu0
    %2607 = vmatprep.mubr.f32.mxu0 0.0
    %v2608 = vand.u32 %v1302, 4294901760
    %2609 = vmatmul.mubr.f32.gmra.mxu0 %v2608
    %v2610 = vpop.f32.mrf.mxu0
    %v2611 = vadd.f32 %v2434, %v2610
    %v2612 = vpop.f32.mrf.mxu0
    %2613 = vmatprep.mubr.f32.mxu0 0.0
    %v2614 = vand.u32 %v1308, 4294901760
    %2615 = vmatmul.mubr.f32.gmra.mxu0 %v2614
    %v2616 = vpop.f32.mrf.mxu0
    %v2617 = vadd.f32 %v2440, %v2616
    %v2618 = vpop.f32.mrf.mxu0
    %2619 = vmatprep.mubr.f32.mxu0 0.0
    %v2620 = vand.u32 %v1314, 4294901760
    %2621 = vmatmul.mubr.f32.gmra.mxu0 %v2620
    %v2622 = vpop.f32.mrf.mxu0
    %v2623 = vadd.f32 %v2446, %v2622
    %v2624 = vpop.f32.mrf.mxu0
    %2625 = vmatprep.mubr.f32.mxu0 0.0
    %v2626 = vand.u32 %v1320, 4294901760
    %2627 = vmatmul.mubr.f32.gmra.mxu0 %v2626
    %v2628 = vpop.f32.mrf.mxu0
    %v2629 = vadd.f32 %v2452, %v2628
    %v2630 = vpop.f32.mrf.mxu0
    %2631 = vmatprep.mubr.f32.mxu0 0.0
    %v2632 = vand.u32 %v1326, 4294901760
    %2633 = vmatmul.mubr.f32.gmra.mxu0 %v2632
    %v2634 = vpop.f32.mrf.mxu0
    %v2635 = vadd.f32 %v2458, %v2634
    %v2636 = vpop.f32.mrf.mxu0
    %2637 = vmatprep.mubr.f32.mxu0 0.0
    %v2638 = vand.u32 %v1332, 4294901760
    %2639 = vmatmul.mubr.f32.gmra.mxu0 %v2638
    %v2640 = vpop.f32.mrf.mxu0
    %v2641 = vadd.f32 %v2464, %v2640
    %v2642 = vpop.f32.mrf.mxu0
    %2643 = vmatprep.mubr.f32.mxu0 0.0
    %v2644 = vand.u32 %v1338, 4294901760
    %2645 = vmatmul.mubr.f32.gmra.mxu0 %v2644
    %v2646 = vpop.f32.mrf.mxu0
    %v2647 = vadd.f32 %v2470, %v2646
    %v2648 = vpop.f32.mrf.mxu0
    %2649 = vmatprep.mubr.f32.mxu0 0.0
    %v2650 = vand.u32 %v1344, 4294901760
    %2651 = vmatmul.mubr.f32.gmra.mxu0 %v2650
    %v2652 = vpop.f32.mrf.mxu0
    %v2653 = vadd.f32 %v2476, %v2652
    %v2654 = vpop.f32.mrf.mxu0
    %2655 = vmatprep.mubr.f32.mxu0 0.0
    %v2656 = vand.u32 %v1350, 4294901760
    %2657 = vmatmul.mubr.f32.gmra.mxu0 %v2656
    %v2658 = vpop.f32.mrf.mxu0
    %v2659 = vadd.f32 %v2482, %v2658
    %v2660 = vpop.f32.mrf.mxu0
    %2661 = vmatprep.mubr.f32.mxu0 0.0
    %v2662 = vand.u32 %v1356, 4294901760
    %2663 = vmatmul.mubr.f32.gmra.mxu0 %v2662
    %v2664 = vpop.f32.mrf.mxu0
    %v2665 = vadd.f32 %v2488, %v2664
    %v2666 = vpop.f32.mrf.mxu0
    %2667 = vmatprep.mubr.f32.mxu0 0.0
    %v2668 = vand.u32 %v1362, 4294901760
    %2669 = vmatmul.mubr.f32.gmra.mxu0 %v2668
    %v2670 = vpop.f32.mrf.mxu0
    %v2671 = vadd.f32 %v2494, %v2670
    %v2672 = vpop.f32.mrf.mxu0
    %2673 = vmatprep.mubr.f32.mxu0 0.0
    %v2674 = vand.u32 %v1368, 4294901760
    %2675 = vmatmul.mubr.f32.gmra.mxu0 %v2674
    %v2676 = vpop.f32.mrf.mxu0
    %v2677 = vadd.f32 %v2500, %v2676
    %v2678 = vpop.f32.mrf.mxu0
    %2679 = vmatprep.mubr.f32.mxu0 0.0
    %v2680 = vand.u32 %v1374, 4294901760
    %2681 = vmatmul.mubr.f32.gmra.mxu0 %v2680
    %v2682 = vpop.f32.mrf.mxu0
    %v2683 = vadd.f32 %v2506, %v2682
    %v2684 = vpop.f32.mrf.mxu0
    %2685 = vdwg.mxu0
    %vm2686 = vcmp.ge.f32.partialorder %v2593, 0.0
    %vm2687 = vcmp.ge.f32.partialorder %v2599, 0.0
    %vm2688 = vcmp.ge.f32.partialorder %v2605, 0.0
    %vm2689 = vcmp.ge.f32.partialorder %v2611, 0.0
    %vm2690 = vcmp.ge.f32.partialorder %v2617, 0.0
    %vm2691 = vcmp.ge.f32.partialorder %v2623, 0.0
    %vm2692 = vcmp.ge.f32.partialorder %v2629, 0.0
    %vm2693 = vcmp.ge.f32.partialorder %v2635, 0.0
    %vm2694 = vcmp.ge.f32.partialorder %v2641, 0.0
    %vm2695 = vcmp.ge.f32.partialorder %v2647, 0.0
    %vm2696 = vcmp.ge.f32.partialorder %v2653, 0.0
    %vm2697 = vcmp.ge.f32.partialorder %v2659, 0.0
    %vm2698 = vcmp.ge.f32.partialorder %v2665, 0.0
    %vm2699 = vcmp.ge.f32.partialorder %v2671, 0.0
    %vm2700 = vcmp.ge.f32.partialorder %v2677, 0.0
    %vm2701 = vcmp.ge.f32.partialorder %v2683, 0.0
    %v2702 = vmul.f32 %v2593, 0.01
    %v2703 = vmul.f32 %v2599, 0.01
    %v2704 = vmul.f32 %v2605, 0.01
    %v2705 = vmul.f32 %v2611, 0.01
    %v2706 = vmul.f32 %v2617, 0.01
    %v2707 = vmul.f32 %v2623, 0.01
    %v2708 = vmul.f32 %v2629, 0.01
    %v2709 = vmul.f32 %v2635, 0.01
    %v2710 = vmul.f32 %v2641, 0.01
    %v2711 = vmul.f32 %v2647, 0.01
    %v2712 = vmul.f32 %v2653, 0.01
    %v2713 = vmul.f32 %v2659, 0.01
    %v2714 = vmul.f32 %v2665, 0.01
    %v2715 = vmul.f32 %v2671, 0.01
    %v2716 = vmul.f32 %v2677, 0.01
    %v2717 = vmul.f32 %v2683, 0.01
    %v2718 = vsel %vm2686, %v2593, %v2702
    %v2719 = vsel %vm2687, %v2599, %v2703
    %v2720 = vsel %vm2688, %v2605, %v2704
    %v2721 = vsel %vm2689, %v2611, %v2705
    %v2722 = vsel %vm2690, %v2617, %v2706
    %v2723 = vsel %vm2691, %v2623, %v2707
    %v2724 = vsel %vm2692, %v2629, %v2708
    %v2725 = vsel %vm2693, %v2635, %v2709
    %v2726 = vsel %vm2694, %v2641, %v2710
    %v2727 = vsel %vm2695, %v2647, %v2711
    %v2728 = vsel %vm2696, %v2653, %v2712
    %v2729 = vsel %vm2697, %v2659, %v2713
    %v2730 = vsel %vm2698, %v2665, %v2714
    %v2731 = vsel %vm2699, %v2671, %v2715
    %v2732 = vsel %vm2700, %v2677, %v2716
    %v2733 = vsel %vm2701, %v2683, %v2717
    %2734 = vst [vmem:[#allocation8] sm:$0xff] %v2718
    %2735 = vst [vmem:[#allocation8 + $0x8] sm:$0xff] %v2719
    %2736 = vst [vmem:[#allocation8 + $0x10] sm:$0xff] %v2720
    %2737 = vst [vmem:[#allocation8 + $0x18] sm:$0xff] %v2721
    %2738 = vst [vmem:[#allocation8 + $0x20] sm:$0xff] %v2722
    %2739 = vst [vmem:[#allocation8 + $0x28] sm:$0xff] %v2723
    %2740 = vst [vmem:[#allocation8 + $0x30] sm:$0xff] %v2724
    %2741 = vst [vmem:[#allocation8 + $0x38] sm:$0xff] %v2725
    %2742 = vst [vmem:[#allocation8 + $0x40] sm:$0xff] %v2726
    %2743 = vst [vmem:[#allocation8 + $0x48] sm:$0xff] %v2727
    %2744 = vst [vmem:[#allocation8 + $0x50] sm:$0xff] %v2728
    %2745 = vst [vmem:[#allocation8 + $0x58] sm:$0xff] %v2729
    %2746 = vst [vmem:[#allocation8 + $0x60] sm:$0xff] %v2730
    %2747 = vst [vmem:[#allocation8 + $0x68] sm:$0xff] %v2731
    %2748 = vst [vmem:[#allocation8 + $0x70] sm:$0xff] %v2732
    %2749 = vst [vmem:[#allocation8 + $0x78] sm:$0xff] %v2733
    // Predicated region
    $region30: #{tpu_custom_call.1} parent=1 // pred_check
      _
    $region31: #{tpu_custom_call.1} parent=1 // pred_check_branch
      %2751 = sbr.rel (0) target = $region33
    $region32: #{tpu_custom_call.1} parent=1 // pred_region
      %s2753 = ssub.s32 2048, 2048
      %2754 = vsyncadd [#allocation4], %s2753
      %s2755 = sshll.u32 [#allocation8], 4
      %s2756 = int_to_ptr.vmem [resolvable:$true] %s2755
      %2761 = dma.vmem_to_hbm [thread:$0]  %s2756, 2048, %s4, [#allocation4], 128, 128, 8
    $region33: #{tpu_custom_call.1} parent=1 // pred_fallthru
      _
    // Predicated region
    $region34: #{tpu_custom_call.1} parent=1 // pred_check
      _
    $region35: #{tpu_custom_call.1} parent=1 // pred_check_branch
      %2763 = sbr.rel (0) target = $region37
    $region36: #{tpu_custom_call.1} parent=1 // pred_region
      %2764 = dma.done [#allocation4], 2048
    $region37: #{tpu_custom_call.1} parent=1 // pred_fallthru
      _
    %2765 = vsyncpa [#allocation3], 1
    %2766 = vsyncpa [#allocation6], 1
    %2767 = vsyncpa [#allocation4], 1

</llo_original>
